<compile_context>
chip_gen: v5e
topology: v5e:2x2
jax: 0.10.0
libtpu: 0.0.40
codegen_flags: <defaults>
</compile_context>

<pallas_src>
import functools

import numpy as np
import jax
import jax.numpy as jnp
from jax import lax
from jax.experimental import pallas as pl
from jax.experimental.pallas import tpu as pltpu

EPS = 1e-5           # BatchNorm2d default eps
LEAKY_SLOPE = 0.01   # LeakyReLU(0.01)


# ----------------------------------------------------------------------------
# Fused CNNBlock kernel
# ----------------------------------------------------------------------------
def _cnn_block_kernel(x_ref, w1_ref, w2_ref, m1_ref, m2_ref, o_ref,
                      col1_ref, y1_ref, col2_ref, *,
                      grid_w, kh, kw, c_in_p, c_mid_p, l_mid, l_out,
                      inv_cnt1, inv_cnt2, mask_mid):
    """[conv 3x3 + BN(train) + LeakyReLU] x 2, intermediate resident in VMEM.

    Layout: channels on sublanes, flattened (n, h, w) on lanes.
      x_ref : (C_in_p,  L_in)          bf16  input activations, lane- and channel-padded
      w1_ref: (C_mid_p, kh*kw*C_in_p)  bf16  tap-packed conv1 weight
      w2_ref: (C_out,   kh*kw*C_mid_p) bf16  tap-packed conv2 weight
      m1_ref: (1, L_mid) f32  1.0 where conv1's true output lives (BN stat mask)
      m2_ref: (1, L_out) f32  1.0 where conv2's true output lives (BN stat mask)
      o_ref : (C_out, L_out) bf16      lane-dense output
    Scratch:
      col1_ref: (kh*kw*C_in_p,  L_mid) bf16  im2col block for conv1
      y1_ref  : (C_mid_p,       L_mid) bf16  VMEM-resident intermediate (never hits HBM)
      col2_ref: (kh*kw*C_mid_p, L_out) bf16  im2col block for conv2
    """

    def bn_lrelu(acc, mask, inv_cnt):
        # BatchNorm2d training stats over the valid lanes only; one pass
        # (biased var = E[x^2] - E[x]^2, f32), gamma=1, beta=0.  `acc*mask` reused.
        am = acc * mask
        mean = jnp.sum(am, axis=1, keepdims=True) * inv_cnt
        var = jnp.sum(am * acc, axis=1, keepdims=True) * inv_cnt - mean * mean
        y = (acc - mean) * lax.rsqrt(var + EPS)
        return jnp.maximum(y, LEAKY_SLOPE * y)            # LeakyReLU(0.01)

    # ---- conv1: fused im2col (9 ref-sliced tap copies) + ONE MXU dot, K = 9*C_in_p ----
    for ky in range(kh):
        for kx in range(kw):
            t = ky * kw + kx
            d = ky * grid_w + kx                           # static lane shift of this tap
            col1_ref[t * c_in_p:(t + 1) * c_in_p, :] = x_ref[:, pl.ds(d, l_mid)]
    acc1 = jnp.dot(w1_ref[...], col1_ref[...], preferred_element_type=jnp.float32)

    y1 = bn_lrelu(acc1, m1_ref[...], inv_cnt1)
    if mask_mid:
        # upsample only: conv2 must see an exact zero ring around conv1's valid window
        # (the implicit zero padding of the second ConvTranspose2d).
        y1 = y1 * m1_ref[...]
    y1_ref[...] = y1.astype(jnp.bfloat16)

    # ---- conv2: same tap-packed scheme, taps sliced from the y1 VMEM scratch ----
    for ky in range(kh):
        for kx in range(kw):
            t = ky * kw + kx
            d = ky * grid_w + kx
            col2_ref[t * c_mid_p:(t + 1) * c_mid_p, :] = y1_ref[:, pl.ds(d, l_out)]
    acc2 = jnp.dot(w2_ref[...], col2_ref[...], preferred_element_type=jnp.float32)

    # No final re-zero: invalid lanes are cropped host-side (or masked by the next block).
    o_ref[...] = bn_lrelu(acc2, m2_ref[...], inv_cnt2).astype(o_ref.dtype)


# ----------------------------------------------------------------------------
# Host-side wrapper (layout glue only; all compute is inside the kernel)
# ----------------------------------------------------------------------------
def _round_up(x, m):
    return (x + m - 1) // m * m


def _make_mask(length, n, hg, wg, off, ext):
    """1.0 on lanes whose flat index s = n*hg*wg + h*wg + w lies in the valid window."""
    s = np.arange(length)
    w = s % wg
    h = (s // wg) % hg
    ok = ((s < n * hg * wg)
          & (w >= off) & (w < off + ext[1])
          & (h >= off) & (h < off + ext[0]))
    return jnp.asarray(ok.astype(np.float32).reshape(1, length))


def _pack_weight(w_oihw, c_out_p, c_in_p):
    """(O, I, kh, kw) -> (c_out_p, kh*kw*c_in_p) bf16, tap-major, zero-padded channels."""
    c_out, c_in, kh, kw = w_oihw.shape
    wt = jnp.transpose(w_oihw, (0, 2, 3, 1))              # (O, kh, kw, I)
    wt = jnp.pad(wt, ((0, c_out_p - c_out), (0, 0), (0, 0), (0, c_in_p - c_in)))
    return wt.reshape(c_out_p, kh * kw * c_in_p).astype(jnp.bfloat16)


@functools.partial(jax.jit, static_argnames=("upsample",))
def cnn_block_forward(x, w1, w2, *, upsample=False):
    """CNNBlock.forward (NCHW in / NCHW out, bf16 out), one fused Pallas TPU kernel call.

    downsample: w1 (C_out, C_in, 3, 3), w2 (C_out, C_out, 3, 3)   [Conv2d, bias=False]
    upsample:   w1 (C_in, C_out, 3, 3), w2 (C_out, C_out, 3, 3)   [ConvTranspose2d, bias=False]
    """
    N, C_in, H, W = x.shape
    KH = KW = 3

    if upsample:
        # ConvTranspose2d(3,1,0) == zero-pad by 2 + valid cross-correlation with the spatially
        # flipped kernel (in/out channels swapped). Two of them chained == pad by 4 up front;
        # the kernel re-zeros the ring between the convs so conv2 sees exact zero padding.
        xg = jnp.pad(x, ((0, 0), (0, 0), (4, 4), (4, 4)))
        w1c = jnp.transpose(w1[:, :, ::-1, ::-1], (1, 0, 2, 3))
        w2c = jnp.transpose(w2[:, :, ::-1, ::-1], (1, 0, 2, 3))
        off1, ext1 = 2, (H + 2, W + 2)      # ConvT1's true output window on the padded grid
        ext2 = (H + 4, W + 4)               # ConvT2's output window (offset 0)
        mask_mid = True
    else:
        xg = x
        w1c, w2c = w1, w2
        off1, ext1 = 0, (H - 2, W - 2)
        ext2 = (H - 4, W - 4)
        mask_mid = False

    C_mid = w1c.shape[0]
    C_out = w2c.shape[0]
    Ng, _, Hg, Wg = xg.shape
    L = Ng * Hg * Wg
    dmax = (KH - 1) * Wg + (KW - 1)          # largest lane shift used by a 3x3 tap
    L_out = _round_up(L, 128)                # lane-dense output stores
    L_mid = _round_up(L_out + dmax, 128)     # lane-dense VMEM-resident intermediate
    L_in = _round_up(L_mid + dmax, 128)      # lane-dense input loads

    C_in_p = _round_up(C_in, 16)             # bf16 packs 16 rows/vreg: aligned im2col row blocks
    C_mid_p = _round_up(C_mid, 16)

    # channels -> sublanes, flat (n, h, w) -> lanes; bf16 for the MXU / halved HBM traffic.
    xf = jnp.transpose(xg, (1, 0, 2, 3)).reshape(C_in, L)
    xf = jnp.pad(xf, ((0, C_in_p - C_in), (0, L_in - L))).astype(jnp.bfloat16)

    # tap-packed weights: column (t, c) of the contraction dim = tap t=ky*3+kx, channel c.
    w1p = _pack_weight(w1c, C_mid_p, C_in_p)     # (C_mid_p, 9*C_in_p)
    w2p = _pack_weight(w2c, C_out, C_mid_p)      # (C_out,   9*C_mid_p)

    # BN-stat masks passed as two tiny f32 inputs (kept host-built to avoid in-kernel int div/mod).
    m1 = _make_mask(L_mid, Ng, Hg, Wg, off1, ext1)
    m2 = _make_mask(L_out, Ng, Hg, Wg, 0, ext2)
    cnt1 = Ng * ext1[0] * ext1[1]
    cnt2 = Ng * ext2[0] * ext2[1]

    kernel = functools.partial(
        _cnn_block_kernel, grid_w=Wg, kh=KH, kw=KW,
        c_in_p=C_in_p, c_mid_p=C_mid_p, l_mid=L_mid, l_out=L_out,
        inv_cnt1=1.0 / cnt1, inv_cnt2=1.0 / cnt2, mask_mid=mask_mid)

    out = pl.pallas_call(
        kernel,
        out_shape=jax.ShapeDtypeStruct((C_out, L_out), jnp.bfloat16),
        grid=(1,),
        in_specs=[
            pl.BlockSpec((C_in_p, L_in), lambda i: (0, 0)),
            pl.BlockSpec((C_mid_p, KH * KW * C_in_p), lambda i: (0, 0)),
            pl.BlockSpec((C_out, KH * KW * C_mid_p), lambda i: (0, 0)),
            pl.BlockSpec((1, L_mid), lambda i: (0, 0)),
            pl.BlockSpec((1, L_out), lambda i: (0, 0)),
        ],
        out_specs=pl.BlockSpec((C_out, L_out), lambda i: (0, 0)),
        scratch_shapes=[
            pltpu.VMEM((KH * KW * C_in_p, L_mid), jnp.bfloat16),   # im2col block, conv1
            pltpu.VMEM((C_mid_p, L_mid), jnp.bfloat16),            # y1 (never hits HBM)
            pltpu.VMEM((KH * KW * C_mid_p, L_out), jnp.bfloat16),  # im2col block, conv2
        ],
        compiler_params=pltpu.CompilerParams(
            dimension_semantics=("arbitrary",),
            vmem_limit_bytes=48 * 1024 * 1024),   # under v7x's 64 MiB physical; raise on v6e
    )(xf, w1p, w2p, m1, m2)

    # back to NCHW and crop to the true output window (bf16 out; next block wants bf16 anyway).
    out = out[:, :L].reshape(C_out, Ng, Hg, Wg).transpose(1, 0, 2, 3)
    return out[:, :, :ext2[0], :ext2[1]]


# ----------------------------------------------------------------------------
# Pure-JAX reference (loose numerical check; kernel uses bf16 MXU inputs + bf16 output)
# ----------------------------------------------------------------------------
def _conv_valid(x, w):
    return lax.conv_general_dilated(
        x, w, window_strides=(1, 1), padding="VALID",
        dimension_numbers=("NCHW", "OIHW", "NCHW"),
        precision=lax.Precision.HIGHEST)


def _bn_lrelu_ref(y):
    mean = jnp.mean(y, axis=(0, 2, 3), keepdims=True)
    var = jnp.mean((y - mean) ** 2, axis=(0, 2, 3), keepdims=True)
    y = (y - mean) * lax.rsqrt(var + EPS)
    return jnp.maximum(y, LEAKY_SLOPE * y)


def _cnn_block_reference(x, w1, w2, *, upsample=False):
    if not upsample:
        y = _bn_lrelu_ref(_conv_valid(x, w1))
        return _bn_lrelu_ref(_conv_valid(y, w2))

    def convT(x_, w_):  # ConvTranspose2d(3,1,0,bias=False)
        w_eq = jnp.transpose(w_[:, :, ::-1, ::-1], (1, 0, 2, 3))
        return _conv_valid(jnp.pad(x_, ((0, 0), (0, 0), (2, 2), (2, 2))), w_eq)

    y = _bn_lrelu_ref(convT(x, w1))
    return _bn_lrelu_ref(convT(y, w2))


# ----------------------------------------------------------------------------
if __name__ == "__main__":
    key = jax.random.PRNGKey(0)
    k1, k2, k3, k4, k5 = jax.random.split(key, 5)

    N, C_in, C_out, H, W = 2, 4, 8, 16, 16
    x = jax.random.normal(k1, (N, C_in, H, W), jnp.float32)

    # --- downsample CNNBlock: Conv2d(C_in, C_out, 3, 1, 0, bias=False) x2 + BN + LeakyReLU ---
    w1_d = jax.random.normal(k2, (C_out, C_in, 3, 3), jnp.float32) * (2.0 / (C_in * 9)) ** 0.5
    w2_d = jax.random.normal(k3, (C_out, C_out, 3, 3), jnp.float32) * (2.0 / (C_out * 9)) ** 0.5

    y_d = jax.block_until_ready(cnn_block_forward(x, w1_d, w2_d, upsample=False))
    assert y_d.shape == (N, C_out, H - 4, W - 4), y_d.shape
    assert bool(jnp.all(jnp.isfinite(y_d)))
    ref_d = _cnn_block_reference(x, w1_d, w2_d, upsample=False)
    err_d = float(jnp.max(jnp.abs(y_d - ref_d)))
    assert err_d < 0.2, err_d   # loose tolerance: bf16 MXU inputs / bf16 output, f32 accumulation

    # --- upsample CNNBlock: ConvTranspose2d(C_in, C_out, 3, 1, 0, bias=False) x2 + BN + LeakyReLU ---
    w1_u = jax.random.normal(k4, (C_in, C_out, 3, 3), jnp.float32) * (2.0 / (C_in * 9)) ** 0.5
    w2_u = jax.random.normal(k5, (C_out, C_out, 3, 3), jnp.float32) * (2.0 / (C_out * 9)) ** 0.5

    y_u = jax.block_until_ready(cnn_block_forward(x, w1_u, w2_u, upsample=True))
    assert y_u.shape == (N, C_out, H + 4, W + 4), y_u.shape
    assert bool(jnp.all(jnp.isfinite(y_u)))
    ref_u = _cnn_block_reference(x, w1_u, w2_u, upsample=True)
    err_u = float(jnp.max(jnp.abs(y_u - ref_u)))
    assert err_u < 0.2, err_u

    print("KERNEL_OK")
</pallas_src>

<mosaic_0001>
module attributes {stable_mosaic.version = 11 : i64} {
  func.func @_cnn_block_kernel(%arg0: i32, %arg1: memref<16x768xbf16, #tpu.memory_space<vmem>>, %arg2: memref<16x144xbf16, #tpu.memory_space<vmem>>, %arg3: memref<8x144xbf16, #tpu.memory_space<vmem>>, %arg4: memref<1x640xf32, #tpu.memory_space<vmem>>, %arg5: memref<1x512xf32, #tpu.memory_space<vmem>>, %arg6: memref<8x512xbf16, #tpu.memory_space<vmem>>, %arg7: memref<144x640xbf16, #tpu.memory_space<vmem>>, %arg8: memref<16x640xbf16, #tpu.memory_space<vmem>>, %arg9: memref<144x512xbf16, #tpu.memory_space<vmem>>) attributes {dimension_semantics = [#tpu.dimension_semantics<arbitrary>], iteration_bounds = array<i64: 1>, scalar_prefetch = 0 : i64, scratch_operands = 3 : i64, tpu.core_type = #tpu.core_type<tc>, window_params = [{pipeline_mode = #tpu.pipeline_mode<synchronous>, transform_indices = @transform_0, window_bounds = array<i64: 16, 768>}, {pipeline_mode = #tpu.pipeline_mode<synchronous>, transform_indices = @transform_1, window_bounds = array<i64: 16, 144>}, {pipeline_mode = #tpu.pipeline_mode<synchronous>, transform_indices = @transform_2, window_bounds = array<i64: 8, 144>}, {pipeline_mode = #tpu.pipeline_mode<synchronous>, transform_indices = @transform_3, window_bounds = array<i64: 1, 640>}, {pipeline_mode = #tpu.pipeline_mode<synchronous>, transform_indices = @transform_4, window_bounds = array<i64: 1, 512>}, {pipeline_mode = #tpu.pipeline_mode<synchronous>, transform_indices = @transform_5, window_bounds = array<i64: 8, 512>}]} {
    %c0 = arith.constant 0 : index
    %c0_0 = arith.constant 0 : index
    %0 = vector.load %arg1[%c0, %c0_0] : memref<16x768xbf16, #tpu.memory_space<vmem>>, vector<16x640xbf16>
    %c0_1 = arith.constant 0 : index
    %c0_2 = arith.constant 0 : index
    %1 = vector.load %arg7[%c0_1, %c0_2] : memref<144x640xbf16, #tpu.memory_space<vmem>>, vector<16x640xbf16>
    tpu.vector_store %arg7[%c0_1, %c0_2], %0 {strides = array<i32>} : memref<144x640xbf16, #tpu.memory_space<vmem>>, vector<16x640xbf16>,
    %c0_3 = arith.constant 0 : index
    %c1 = arith.constant 1 : index
    %2 = vector.load %arg1[%c0_3, %c1] : memref<16x768xbf16, #tpu.memory_space<vmem>>, vector<16x640xbf16>
    %c16 = arith.constant 16 : index
    %c0_4 = arith.constant 0 : index
    %3 = vector.load %arg7[%c16, %c0_4] : memref<144x640xbf16, #tpu.memory_space<vmem>>, vector<16x640xbf16>
    tpu.vector_store %arg7[%c16, %c0_4], %2 {strides = array<i32>} : memref<144x640xbf16, #tpu.memory_space<vmem>>, vector<16x640xbf16>,
    %c0_5 = arith.constant 0 : index
    %c2 = arith.constant 2 : index
    %4 = vector.load %arg1[%c0_5, %c2] : memref<16x768xbf16, #tpu.memory_space<vmem>>, vector<16x640xbf16>
    %c32 = arith.constant 32 : index
    %c0_6 = arith.constant 0 : index
    %5 = vector.load %arg7[%c32, %c0_6] : memref<144x640xbf16, #tpu.memory_space<vmem>>, vector<16x640xbf16>
    tpu.vector_store %arg7[%c32, %c0_6], %4 {strides = array<i32>} : memref<144x640xbf16, #tpu.memory_space<vmem>>, vector<16x640xbf16>,
    %c0_7 = arith.constant 0 : index
    %c16_8 = arith.constant 16 : index
    %6 = vector.load %arg1[%c0_7, %c16_8] : memref<16x768xbf16, #tpu.memory_space<vmem>>, vector<16x640xbf16>
    %c48 = arith.constant 48 : index
    %c0_9 = arith.constant 0 : index
    %7 = vector.load %arg7[%c48, %c0_9] : memref<144x640xbf16, #tpu.memory_space<vmem>>, vector<16x640xbf16>
    tpu.vector_store %arg7[%c48, %c0_9], %6 {strides = array<i32>} : memref<144x640xbf16, #tpu.memory_space<vmem>>, vector<16x640xbf16>,
    %c0_10 = arith.constant 0 : index
    %c17 = arith.constant 17 : index
    %8 = vector.load %arg1[%c0_10, %c17] : memref<16x768xbf16, #tpu.memory_space<vmem>>, vector<16x640xbf16>
    %c64 = arith.constant 64 : index
    %c0_11 = arith.constant 0 : index
    %9 = vector.load %arg7[%c64, %c0_11] : memref<144x640xbf16, #tpu.memory_space<vmem>>, vector<16x640xbf16>
    tpu.vector_store %arg7[%c64, %c0_11], %8 {strides = array<i32>} : memref<144x640xbf16, #tpu.memory_space<vmem>>, vector<16x640xbf16>,
    %c0_12 = arith.constant 0 : index
    %c18 = arith.constant 18 : index
    %10 = vector.load %arg1[%c0_12, %c18] : memref<16x768xbf16, #tpu.memory_space<vmem>>, vector<16x640xbf16>
    %c80 = arith.constant 80 : index
    %c0_13 = arith.constant 0 : index
    %11 = vector.load %arg7[%c80, %c0_13] : memref<144x640xbf16, #tpu.memory_space<vmem>>, vector<16x640xbf16>
    tpu.vector_store %arg7[%c80, %c0_13], %10 {strides = array<i32>} : memref<144x640xbf16, #tpu.memory_space<vmem>>, vector<16x640xbf16>,
    %c0_14 = arith.constant 0 : index
    %c32_15 = arith.constant 32 : index
    %12 = vector.load %arg1[%c0_14, %c32_15] : memref<16x768xbf16, #tpu.memory_space<vmem>>, vector<16x640xbf16>
    %c96 = arith.constant 96 : index
    %c0_16 = arith.constant 0 : index
    %13 = vector.load %arg7[%c96, %c0_16] : memref<144x640xbf16, #tpu.memory_space<vmem>>, vector<16x640xbf16>
    tpu.vector_store %arg7[%c96, %c0_16], %12 {strides = array<i32>} : memref<144x640xbf16, #tpu.memory_space<vmem>>, vector<16x640xbf16>,
    %c0_17 = arith.constant 0 : index
    %c33 = arith.constant 33 : index
    %14 = vector.load %arg1[%c0_17, %c33] : memref<16x768xbf16, #tpu.memory_space<vmem>>, vector<16x640xbf16>
    %c112 = arith.constant 112 : index
    %c0_18 = arith.constant 0 : index
    %15 = vector.load %arg7[%c112, %c0_18] : memref<144x640xbf16, #tpu.memory_space<vmem>>, vector<16x640xbf16>
    tpu.vector_store %arg7[%c112, %c0_18], %14 {strides = array<i32>} : memref<144x640xbf16, #tpu.memory_space<vmem>>, vector<16x640xbf16>,
    %c0_19 = arith.constant 0 : index
    %c34 = arith.constant 34 : index
    %16 = vector.load %arg1[%c0_19, %c34] : memref<16x768xbf16, #tpu.memory_space<vmem>>, vector<16x640xbf16>
    %c128 = arith.constant 128 : index
    %c0_20 = arith.constant 0 : index
    %17 = vector.load %arg7[%c128, %c0_20] : memref<144x640xbf16, #tpu.memory_space<vmem>>, vector<16x640xbf16>
    tpu.vector_store %arg7[%c128, %c0_20], %16 {strides = array<i32>} : memref<144x640xbf16, #tpu.memory_space<vmem>>, vector<16x640xbf16>,
    %c0_21 = arith.constant 0 : index
    %c0_22 = arith.constant 0 : index
    %18 = vector.load %arg2[%c0_21, %c0_22] : memref<16x144xbf16, #tpu.memory_space<vmem>>, vector<16x144xbf16>
    %c0_23 = arith.constant 0 : index
    %c0_24 = arith.constant 0 : index
    %19 = vector.load %arg7[%c0_23, %c0_24] : memref<144x640xbf16, #tpu.memory_space<vmem>>, vector<144x640xbf16>
    %cst = arith.constant dense<0.000000e+00> : vector<16x640xf32>
    %20 = tpu.matmul %18, %19, %cst {dimension_numbers = #tpu.dot_dimension_numbers<[1], [0], [0], [1], [0, 0, 1, 1], [], []>} : vector<16x144xbf16>, vector<144x640xbf16>, vector<16x640xf32> -> vector<16x640xf32>
    %c0_25 = arith.constant 0 : index
    %c0_26 = arith.constant 0 : index
    %21 = vector.load %arg4[%c0_25, %c0_26] : memref<1x640xf32, #tpu.memory_space<vmem>>, vector<1x640xf32>
    %22 = vector.broadcast %21 : vector<1x640xf32> to vector<16x640xf32>
    %23 = arith.mulf %20, %22 : vector<16x640xf32>
    %cst_27 = arith.constant dense<0.000000e+00> : vector<16xf32>
    %24 = vector.multi_reduction <add>, %23, %cst_27 [1] : vector<16x640xf32> to vector<16xf32>
    %25 = vector.shape_cast %24 : vector<16xf32> to vector<16x1xf32>
    %cst_28 = arith.constant 0.00255102036 : f32
    %26 = vector.broadcast %cst_28 : f32 to vector<16x1xf32>
    %27 = arith.mulf %25, %26 : vector<16x1xf32>
    %28 = arith.mulf %23, %20 : vector<16x640xf32>
    %cst_29 = arith.constant dense<0.000000e+00> : vector<16xf32>
    %29 = vector.multi_reduction <add>, %28, %cst_29 [1] : vector<16x640xf32> to vector<16xf32>
    %30 = vector.shape_cast %29 : vector<16xf32> to vector<16x1xf32>
    %cst_30 = arith.constant 0.00255102036 : f32
    %31 = vector.broadcast %cst_30 : f32 to vector<16x1xf32>
    %32 = arith.mulf %30, %31 : vector<16x1xf32>
    %33 = arith.mulf %27, %27 : vector<16x1xf32>
    %34 = arith.subf %32, %33 : vector<16x1xf32>
    %35 = vector.broadcast %27 : vector<16x1xf32> to vector<16x640xf32>
    %36 = arith.subf %20, %35 : vector<16x640xf32>
    %cst_31 = arith.constant 9.99999974E-6 : f32
    %37 = vector.broadcast %cst_31 : f32 to vector<16x1xf32>
    %38 = arith.addf %34, %37 : vector<16x1xf32>
    %39 = math.rsqrt %38 : vector<16x1xf32>
    %40 = vector.broadcast %39 : vector<16x1xf32> to vector<16x640xf32>
    %41 = arith.mulf %36, %40 : vector<16x640xf32>
    %cst_32 = arith.constant 0.00999999977 : f32
    %42 = vector.broadcast %cst_32 : f32 to vector<16x640xf32>
    %43 = arith.mulf %42, %41 : vector<16x640xf32>
    %44 = arith.maximumf %41, %43 : vector<16x640xf32>
    %45 = arith.truncf %44 : vector<16x640xf32> to vector<16x640xbf16>
    %c0_33 = arith.constant 0 : index
    %c0_34 = arith.constant 0 : index
    %46 = vector.load %arg8[%c0_33, %c0_34] : memref<16x640xbf16, #tpu.memory_space<vmem>>, vector<16x640xbf16>
    tpu.vector_store %arg8[%c0_33, %c0_34], %45 {strides = array<i32>} : memref<16x640xbf16, #tpu.memory_space<vmem>>, vector<16x640xbf16>,
    %c0_35 = arith.constant 0 : index
    %c0_36 = arith.constant 0 : index
    %47 = vector.load %arg8[%c0_35, %c0_36] : memref<16x640xbf16, #tpu.memory_space<vmem>>, vector<16x512xbf16>
    %c0_37 = arith.constant 0 : index
    %c0_38 = arith.constant 0 : index
    %48 = vector.load %arg9[%c0_37, %c0_38] : memref<144x512xbf16, #tpu.memory_space<vmem>>, vector<16x512xbf16>
    tpu.vector_store %arg9[%c0_37, %c0_38], %47 {strides = array<i32>} : memref<144x512xbf16, #tpu.memory_space<vmem>>, vector<16x512xbf16>,
    %c0_39 = arith.constant 0 : index
    %c1_40 = arith.constant 1 : index
    %49 = vector.load %arg8[%c0_39, %c1_40] : memref<16x640xbf16, #tpu.memory_space<vmem>>, vector<16x512xbf16>
    %c16_41 = arith.constant 16 : index
    %c0_42 = arith.constant 0 : index
    %50 = vector.load %arg9[%c16_41, %c0_42] : memref<144x512xbf16, #tpu.memory_space<vmem>>, vector<16x512xbf16>
    tpu.vector_store %arg9[%c16_41, %c0_42], %49 {strides = array<i32>} : memref<144x512xbf16, #tpu.memory_space<vmem>>, vector<16x512xbf16>,
    %c0_43 = arith.constant 0 : index
    %c2_44 = arith.constant 2 : index
    %51 = vector.load %arg8[%c0_43, %c2_44] : memref<16x640xbf16, #tpu.memory_space<vmem>>, vector<16x512xbf16>
    %c32_45 = arith.constant 32 : index
    %c0_46 = arith.constant 0 : index
    %52 = vector.load %arg9[%c32_45, %c0_46] : memref<144x512xbf16, #tpu.memory_space<vmem>>, vector<16x512xbf16>
    tpu.vector_store %arg9[%c32_45, %c0_46], %51 {strides = array<i32>} : memref<144x512xbf16, #tpu.memory_space<vmem>>, vector<16x512xbf16>,
    %c0_47 = arith.constant 0 : index
    %c16_48 = arith.constant 16 : index
    %53 = vector.load %arg8[%c0_47, %c16_48] : memref<16x640xbf16, #tpu.memory_space<vmem>>, vector<16x512xbf16>
    %c48_49 = arith.constant 48 : index
    %c0_50 = arith.constant 0 : index
    %54 = vector.load %arg9[%c48_49, %c0_50] : memref<144x512xbf16, #tpu.memory_space<vmem>>, vector<16x512xbf16>
    tpu.vector_store %arg9[%c48_49, %c0_50], %53 {strides = array<i32>} : memref<144x512xbf16, #tpu.memory_space<vmem>>, vector<16x512xbf16>,
    %c0_51 = arith.constant 0 : index
    %c17_52 = arith.constant 17 : index
    %55 = vector.load %arg8[%c0_51, %c17_52] : memref<16x640xbf16, #tpu.memory_space<vmem>>, vector<16x512xbf16>
    %c64_53 = arith.constant 64 : index
    %c0_54 = arith.constant 0 : index
    %56 = vector.load %arg9[%c64_53, %c0_54] : memref<144x512xbf16, #tpu.memory_space<vmem>>, vector<16x512xbf16>
    tpu.vector_store %arg9[%c64_53, %c0_54], %55 {strides = array<i32>} : memref<144x512xbf16, #tpu.memory_space<vmem>>, vector<16x512xbf16>,
    %c0_55 = arith.constant 0 : index
    %c18_56 = arith.constant 18 : index
    %57 = vector.load %arg8[%c0_55, %c18_56] : memref<16x640xbf16, #tpu.memory_space<vmem>>, vector<16x512xbf16>
    %c80_57 = arith.constant 80 : index
    %c0_58 = arith.constant 0 : index
    %58 = vector.load %arg9[%c80_57, %c0_58] : memref<144x512xbf16, #tpu.memory_space<vmem>>, vector<16x512xbf16>
    tpu.vector_store %arg9[%c80_57, %c0_58], %57 {strides = array<i32>} : memref<144x512xbf16, #tpu.memory_space<vmem>>, vector<16x512xbf16>,
    %c0_59 = arith.constant 0 : index
    %c32_60 = arith.constant 32 : index
    %59 = vector.load %arg8[%c0_59, %c32_60] : memref<16x640xbf16, #tpu.memory_space<vmem>>, vector<16x512xbf16>
    %c96_61 = arith.constant 96 : index
    %c0_62 = arith.constant 0 : index
    %60 = vector.load %arg9[%c96_61, %c0_62] : memref<144x512xbf16, #tpu.memory_space<vmem>>, vector<16x512xbf16>
    tpu.vector_store %arg9[%c96_61, %c0_62], %59 {strides = array<i32>} : memref<144x512xbf16, #tpu.memory_space<vmem>>, vector<16x512xbf16>,
    %c0_63 = arith.constant 0 : index
    %c33_64 = arith.constant 33 : index
    %61 = vector.load %arg8[%c0_63, %c33_64] : memref<16x640xbf16, #tpu.memory_space<vmem>>, vector<16x512xbf16>
    %c112_65 = arith.constant 112 : index
    %c0_66 = arith.constant 0 : index
    %62 = vector.load %arg9[%c112_65, %c0_66] : memref<144x512xbf16, #tpu.memory_space<vmem>>, vector<16x512xbf16>
    tpu.vector_store %arg9[%c112_65, %c0_66], %61 {strides = array<i32>} : memref<144x512xbf16, #tpu.memory_space<vmem>>, vector<16x512xbf16>,
    %c0_67 = arith.constant 0 : index
    %c34_68 = arith.constant 34 : index
    %63 = vector.load %arg8[%c0_67, %c34_68] : memref<16x640xbf16, #tpu.memory_space<vmem>>, vector<16x512xbf16>
    %c128_69 = arith.constant 128 : index
    %c0_70 = arith.constant 0 : index
    %64 = vector.load %arg9[%c128_69, %c0_70] : memref<144x512xbf16, #tpu.memory_space<vmem>>, vector<16x512xbf16>
    tpu.vector_store %arg9[%c128_69, %c0_70], %63 {strides = array<i32>} : memref<144x512xbf16, #tpu.memory_space<vmem>>, vector<16x512xbf16>,
    %c0_71 = arith.constant 0 : index
    %c0_72 = arith.constant 0 : index
    %65 = vector.load %arg3[%c0_71, %c0_72] : memref<8x144xbf16, #tpu.memory_space<vmem>>, vector<8x144xbf16>
    %c0_73 = arith.constant 0 : index
    %c0_74 = arith.constant 0 : index
    %66 = vector.load %arg9[%c0_73, %c0_74] : memref<144x512xbf16, #tpu.memory_space<vmem>>, vector<144x512xbf16>
    %cst_75 = arith.constant dense<0.000000e+00> : vector<8x512xf32>
    %67 = tpu.matmul %65, %66, %cst_75 {dimension_numbers = #tpu.dot_dimension_numbers<[1], [0], [0], [1], [0, 0, 1, 1], [], []>} : vector<8x144xbf16>, vector<144x512xbf16>, vector<8x512xf32> -> vector<8x512xf32>
    %c0_76 = arith.constant 0 : index
    %c0_77 = arith.constant 0 : index
    %68 = vector.load %arg5[%c0_76, %c0_77] : memref<1x512xf32, #tpu.memory_space<vmem>>, vector<1x512xf32>
    %69 = vector.broadcast %68 : vector<1x512xf32> to vector<8x512xf32>
    %70 = arith.mulf %67, %69 : vector<8x512xf32>
    %cst_78 = arith.constant dense<0.000000e+00> : vector<8xf32>
    %71 = vector.multi_reduction <add>, %70, %cst_78 [1] : vector<8x512xf32> to vector<8xf32>
    %72 = vector.shape_cast %71 : vector<8xf32> to vector<8x1xf32>
    %cst_79 = arith.constant 0.00347222225 : f32
    %73 = vector.broadcast %cst_79 : f32 to vector<8x1xf32>
    %74 = arith.mulf %72, %73 : vector<8x1xf32>
    %75 = arith.mulf %70, %67 : vector<8x512xf32>
    %cst_80 = arith.constant dense<0.000000e+00> : vector<8xf32>
    %76 = vector.multi_reduction <add>, %75, %cst_80 [1] : vector<8x512xf32> to vector<8xf32>
    %77 = vector.shape_cast %76 : vector<8xf32> to vector<8x1xf32>
    %cst_81 = arith.constant 0.00347222225 : f32
    %78 = vector.broadcast %cst_81 : f32 to vector<8x1xf32>
    %79 = arith.mulf %77, %78 : vector<8x1xf32>
    %80 = arith.mulf %74, %74 : vector<8x1xf32>
    %81 = arith.subf %79, %80 : vector<8x1xf32>
    %82 = vector.broadcast %74 : vector<8x1xf32> to vector<8x512xf32>
    %83 = arith.subf %67, %82 : vector<8x512xf32>
    %cst_82 = arith.constant 9.99999974E-6 : f32
    %84 = vector.broadcast %cst_82 : f32 to vector<8x1xf32>
    %85 = arith.addf %81, %84 : vector<8x1xf32>
    %86 = math.rsqrt %85 : vector<8x1xf32>
    %87 = vector.broadcast %86 : vector<8x1xf32> to vector<8x512xf32>
    %88 = arith.mulf %83, %87 : vector<8x512xf32>
    %cst_83 = arith.constant 0.00999999977 : f32
    %89 = vector.broadcast %cst_83 : f32 to vector<8x512xf32>
    %90 = arith.mulf %89, %88 : vector<8x512xf32>
    %91 = arith.maximumf %88, %90 : vector<8x512xf32>
    %92 = arith.truncf %91 : vector<8x512xf32> to vector<8x512xbf16>
    %c0_84 = arith.constant 0 : index
    %c0_85 = arith.constant 0 : index
    %93 = vector.load %arg6[%c0_84, %c0_85] : memref<8x512xbf16, #tpu.memory_space<vmem>>, vector<8x512xbf16>
    tpu.vector_store %arg6[%c0_84, %c0_85], %92 {strides = array<i32>} : memref<8x512xbf16, #tpu.memory_space<vmem>>, vector<8x512xbf16>,
    return
  }
  func.func @transform_0(%arg0: i32) -> (i32, i32) {
    %c0_i32 = arith.constant 0 : i32
    %c0_i32_0 = arith.constant 0 : i32
    %c0_i32_1 = arith.constant 0 : i32
    return %c0_i32, %c0_i32_0 : i32, i32
  }
  func.func @transform_1(%arg0: i32) -> (i32, i32) {
    %c0_i32 = arith.constant 0 : i32
    %c0_i32_0 = arith.constant 0 : i32
    %c0_i32_1 = arith.constant 0 : i32
    return %c0_i32, %c0_i32_0 : i32, i32
  }
  func.func @transform_2(%arg0: i32) -> (i32, i32) {
    %c0_i32 = arith.constant 0 : i32
    %c0_i32_0 = arith.constant 0 : i32
    %c0_i32_1 = arith.constant 0 : i32
    return %c0_i32, %c0_i32_0 : i32, i32
  }
  func.func @transform_3(%arg0: i32) -> (i32, i32) {
    %c0_i32 = arith.constant 0 : i32
    %c0_i32_0 = arith.constant 0 : i32
    %c0_i32_1 = arith.constant 0 : i32
    return %c0_i32, %c0_i32_0 : i32, i32
  }
  func.func @transform_4(%arg0: i32) -> (i32, i32) {
    %c0_i32 = arith.constant 0 : i32
    %c0_i32_0 = arith.constant 0 : i32
    %c0_i32_1 = arith.constant 0 : i32
    return %c0_i32, %c0_i32_0 : i32, i32
  }
  func.func @transform_5(%arg0: i32) -> (i32, i32) {
    %c0_i32 = arith.constant 0 : i32
    %c0_i32_0 = arith.constant 0 : i32
    %c0_i32_1 = arith.constant 0 : i32
    return %c0_i32, %c0_i32_0 : i32, i32
  }
}

</mosaic_0001>

<llo_original>
// kernel: cnn_block_forward.1
$region0: #{cnn_block_forward.1}
  #allocation0 [shape = 'u32[]', space=smem, size = 0x4, offset = 0x4, fixed_abs, tag = 'smem constant byte address 0x4 - core index']
  #allocation1 [shape = 'u32[72,128]{1,0:T(1,128)}', space=vmem, size = 0x9000, scoped, tag = 'internal scratch']
  #allocation2 [shape = 'bf16[144,640]{1,0:T(8,128)(2,1)}', space=vmem, size = 0x2d000, scoped, tag = 'scratch operand']
  #allocation3 [shape = 'bf16[16,640]{1,0:T(8,128)(2,1)}', space=vmem, size = 0x5000, scoped, tag = 'scratch operand']
  #allocation4 [shape = 'bf16[144,512]{1,0:T(8,128)(2,1)}', space=vmem, size = 0x24000, scoped, tag = 'scratch operand']
  %s0 = inlined_call_operand.vmem [shape: bf16[16,768], index: 0, kind: input, shape index: {}]
  %s1 = inlined_call_operand.vmem [shape: bf16[16,144], index: 1, kind: input, shape index: {}]
  %s2 = inlined_call_operand.vmem [shape: bf16[8,144], index: 2, kind: input, shape index: {}]
  %s3 = inlined_call_operand.vmem [shape: f32[1,640], index: 3, kind: input, shape index: {}]
  %s4 = inlined_call_operand.vmem [shape: f32[1,512], index: 4, kind: input, shape index: {}]
  %s5 = inlined_call_operand.vmem [shape: bf16[8,512], index: 5, kind: output, shape index: {}]
  %s6 = sld [smem:[#allocation0]]
  $region30: #{cnn_block_forward.1} parent=0
    _
  %s8 = ssub.s32 1, %s6
  %s9 = scalar_select 0, %s8, %s6
  // Predicated region
  $region2: #{cnn_block_forward.1} parent=0 // pred_check
    _
  $region3: #{cnn_block_forward.1} parent=0 // pred_check_branch
    %11 = sbr.rel (0) target = $region5
  $region4: #{cnn_block_forward.1} parent=0 // pred_region
    _
  $region5: #{cnn_block_forward.1} parent=0 // pred_fallthru
    _
  // Predicated region
  $region6: #{cnn_block_forward.1} parent=0 // pred_check
    _
  $region7: #{cnn_block_forward.1} parent=0 // pred_check_branch
    %13 = sbr.rel (0) target = $region9
  $region8: #{cnn_block_forward.1} parent=0 // pred_region
    _
  $region9: #{cnn_block_forward.1} parent=0 // pred_fallthru
    _
  // Predicated region
  $region10: #{cnn_block_forward.1} parent=0 // pred_check
    _
  $region11: #{cnn_block_forward.1} parent=0 // pred_check_branch
    %15 = sbr.rel (0) target = $region13
  $region12: #{cnn_block_forward.1} parent=0 // pred_region
    _
  $region13: #{cnn_block_forward.1} parent=0 // pred_fallthru
    _
  // Predicated region
  $region14: #{cnn_block_forward.1} parent=0 // pred_check
    _
  $region15: #{cnn_block_forward.1} parent=0 // pred_check_branch
    %17 = sbr.rel (0) target = $region17
  $region16: #{cnn_block_forward.1} parent=0 // pred_region
    _
  $region17: #{cnn_block_forward.1} parent=0 // pred_fallthru
    _
  // Predicated region
  $region18: #{cnn_block_forward.1} parent=0 // pred_check
    _
  $region19: #{cnn_block_forward.1} parent=0 // pred_check_branch
    %19 = sbr.rel (0) target = $region21
  $region20: #{cnn_block_forward.1} parent=0 // pred_region
    _
  $region21: #{cnn_block_forward.1} parent=0 // pred_fallthru
    _
  %v21 = vld [vmem:[%s0] sm:$0xff]
  %v22 = vld [vmem:[%s0 + $0x8] sm:$0xff]
  %v23 = vld [vmem:[%s0 + $0x10] sm:$0xf]
  %v24 = vld [vmem:[%s0 + $0x18] sm:$0xff]
  %v25 = vld [vmem:[%s0 + $0x20] sm:$0xff]
  %v26 = vld [vmem:[%s0 + $0x28] sm:$0xf]
  %27 = vst [vmem:[#allocation2] sm:$0xff] %v21
  %28 = vst [vmem:[#allocation2 + $0x8] sm:$0xff] %v22
  %29 = vst [vmem:[#allocation2 + $0x10] sm:$0xf] %v23
  %30 = vst [vmem:[#allocation2 + $0x14] sm:$0xff] %v24
  %31 = vst [vmem:[#allocation2 + $0x1c] sm:$0xff] %v25
  %32 = vst [vmem:[#allocation2 + $0x24] sm:$0xf] %v26
  %v33 = vld [vmem:[%s0] sm:$0xff]
  %v34 = vld [vmem:[%s0 + $0x8] sm:$0xff]
  %v35 = vld [vmem:[%s0 + $0x10] sm:$0xff]
  %v36 = vld [vmem:[%s0 + $0x18] sm:$0xff]
  %v37 = vld [vmem:[%s0 + $0x20] sm:$0xff]
  %v38 = vld [vmem:[%s0 + $0x28] sm:$0xff]
  %45 = vrot.lane.b32.xlu0 %v33, 127
  %v46 = vpop.permute.xlu0 %45
  %47 = vrot.lane.b32.xlu0 %v34, 127
  %v48 = vpop.permute.xlu0 %47
  %49 = vrot.lane.b32.xlu0 %v35, 127
  %v50 = vpop.permute.xlu0 %49
  %51 = vrot.lane.b32.xlu0 %v36, 127
  %v52 = vpop.permute.xlu0 %51
  %53 = vrot.lane.b32.xlu0 %v37, 127
  %v54 = vpop.permute.xlu0 %53
  %55 = vrot.lane.b32.xlu0 %v38, 127
  %v56 = vpop.permute.xlu0 %55
  %v57 = vrot.slane %v46, 4
  %v58 = vrot.slane %v48, 4
  %v59 = vrot.slane %v50, 4
  %v60 = vrot.slane %v52, 4
  %v61 = vrot.slane %v54, 4
  %v62 = vrot.slane %v56, 4
  %vm63 = vcmask 1043456
  %v64 = vsel %vm63, %v57, %v58
  %vm65 = vcmask 1039360
  %v66 = vsel %vm65, %v46, %v64
  %v67 = vsel %vm63, %v58, %v59
  %v68 = vsel %vm65, %v48, %v67
  %v69 = vsel %vm65, %v50, %v59
  %v70 = vsel %vm63, %v60, %v61
  %v71 = vsel %vm65, %v52, %v70
  %v72 = vsel %vm63, %v61, %v62
  %v73 = vsel %vm65, %v54, %v72
  %v74 = vsel %vm65, %v56, %v62
  %81 = vst [vmem:[#allocation2 + $0x28] sm:$0xff] %v66
  %82 = vst [vmem:[#allocation2 + $0x30] sm:$0xff] %v68
  %83 = vst [vmem:[#allocation2 + $0x38] sm:$0xf] %v69
  %84 = vst [vmem:[#allocation2 + $0x3c] sm:$0xff] %v71
  %85 = vst [vmem:[#allocation2 + $0x44] sm:$0xff] %v73
  %86 = vst [vmem:[#allocation2 + $0x4c] sm:$0xf] %v74
  %v87 = vld [vmem:[%s0] sm:$0xff]
  %v88 = vld [vmem:[%s0 + $0x8] sm:$0xff]
  %v89 = vld [vmem:[%s0 + $0x10] sm:$0xff]
  %v90 = vld [vmem:[%s0 + $0x18] sm:$0xff]
  %v91 = vld [vmem:[%s0 + $0x20] sm:$0xff]
  %v92 = vld [vmem:[%s0 + $0x28] sm:$0xff]
  %99 = vrot.lane.b32.xlu0 %v87, 126
  %v100 = vpop.permute.xlu0 %99
  %101 = vrot.lane.b32.xlu0 %v88, 126
  %v102 = vpop.permute.xlu0 %101
  %103 = vrot.lane.b32.xlu0 %v89, 126
  %v104 = vpop.permute.xlu0 %103
  %105 = vrot.lane.b32.xlu0 %v90, 126
  %v106 = vpop.permute.xlu0 %105
  %107 = vrot.lane.b32.xlu0 %v91, 126
  %v108 = vpop.permute.xlu0 %107
  %109 = vrot.lane.b32.xlu0 %v92, 126
  %v110 = vpop.permute.xlu0 %109
  %v111 = vrot.slane %v100, 4
  %v112 = vrot.slane %v102, 4
  %v113 = vrot.slane %v104, 4
  %v114 = vrot.slane %v106, 4
  %v115 = vrot.slane %v108, 4
  %v116 = vrot.slane %v110, 4
  %v117 = vsel %vm63, %v111, %v112
  %vm118 = vcmask 1031168
  %v119 = vsel %vm118, %v100, %v117
  %v120 = vsel %vm63, %v112, %v113
  %v121 = vsel %vm118, %v102, %v120
  %v122 = vsel %vm118, %v104, %v113
  %v123 = vsel %vm63, %v114, %v115
  %v124 = vsel %vm118, %v106, %v123
  %v125 = vsel %vm63, %v115, %v116
  %v126 = vsel %vm118, %v108, %v125
  %v127 = vsel %vm118, %v110, %v116
  %134 = vst [vmem:[#allocation2 + $0x50] sm:$0xff] %v119
  %135 = vst [vmem:[#allocation2 + $0x58] sm:$0xff] %v121
  %136 = vst [vmem:[#allocation2 + $0x60] sm:$0xf] %v122
  %137 = vst [vmem:[#allocation2 + $0x64] sm:$0xff] %v124
  %138 = vst [vmem:[#allocation2 + $0x6c] sm:$0xff] %v126
  %139 = vst [vmem:[#allocation2 + $0x74] sm:$0xf] %v127
  %v140 = vld [vmem:[%s0] sm:$0xff]
  %v141 = vld [vmem:[%s0 + $0x8] sm:$0xff]
  %v142 = vld [vmem:[%s0 + $0x10] sm:$0xff]
  %v143 = vld [vmem:[%s0 + $0x18] sm:$0xff]
  %v144 = vld [vmem:[%s0 + $0x20] sm:$0xff]
  %v145 = vld [vmem:[%s0 + $0x28] sm:$0xff]
  %152 = vrot.lane.b32.xlu0 %v140, 112
  %v153 = vpop.permute.xlu0 %152
  %154 = vrot.lane.b32.xlu0 %v141, 112
  %v155 = vpop.permute.xlu0 %154
  %156 = vrot.lane.b32.xlu0 %v142, 112
  %v157 = vpop.permute.xlu0 %156
  %158 = vrot.lane.b32.xlu0 %v143, 112
  %v159 = vpop.permute.xlu0 %158
  %160 = vrot.lane.b32.xlu0 %v144, 112
  %v161 = vpop.permute.xlu0 %160
  %162 = vrot.lane.b32.xlu0 %v145, 112
  %v163 = vpop.permute.xlu0 %162
  %v164 = vrot.slane %v153, 4
  %v165 = vrot.slane %v155, 4
  %v166 = vrot.slane %v157, 4
  %v167 = vrot.slane %v159, 4
  %v168 = vrot.slane %v161, 4
  %v169 = vrot.slane %v163, 4
  %v170 = vsel %vm63, %v164, %v165
  %vm171 = vcmask 916480
  %v172 = vsel %vm171, %v153, %v170
  %v173 = vsel %vm63, %v165, %v166
  %v174 = vsel %vm171, %v155, %v173
  %v175 = vsel %vm171, %v157, %v166
  %v176 = vsel %vm63, %v167, %v168
  %v177 = vsel %vm171, %v159, %v176
  %v178 = vsel %vm63, %v168, %v169
  %v179 = vsel %vm171, %v161, %v178
  %v180 = vsel %vm171, %v163, %v169
  %187 = vst [vmem:[#allocation2 + $0x78] sm:$0xff] %v172
  %188 = vst [vmem:[#allocation2 + $0x80] sm:$0xff] %v174
  %189 = vst [vmem:[#allocation2 + $0x88] sm:$0xf] %v175
  %190 = vst [vmem:[#allocation2 + $0x8c] sm:$0xff] %v177
  %191 = vst [vmem:[#allocation2 + $0x94] sm:$0xff] %v179
  %192 = vst [vmem:[#allocation2 + $0x9c] sm:$0xf] %v180
  %v193 = vld [vmem:[%s0] sm:$0xff]
  %v194 = vld [vmem:[%s0 + $0x8] sm:$0xff]
  %v195 = vld [vmem:[%s0 + $0x10] sm:$0xff]
  %v196 = vld [vmem:[%s0 + $0x18] sm:$0xff]
  %v197 = vld [vmem:[%s0 + $0x20] sm:$0xff]
  %v198 = vld [vmem:[%s0 + $0x28] sm:$0xff]
  %205 = vrot.lane.b32.xlu0 %v193, 111
  %v206 = vpop.permute.xlu0 %205
  %207 = vrot.lane.b32.xlu0 %v194, 111
  %v208 = vpop.permute.xlu0 %207
  %209 = vrot.lane.b32.xlu0 %v195, 111
  %v210 = vpop.permute.xlu0 %209
  %211 = vrot.lane.b32.xlu0 %v196, 111
  %v212 = vpop.permute.xlu0 %211
  %213 = vrot.lane.b32.xlu0 %v197, 111
  %v214 = vpop.permute.xlu0 %213
  %215 = vrot.lane.b32.xlu0 %v198, 111
  %v216 = vpop.permute.xlu0 %215
  %v217 = vrot.slane %v206, 4
  %v218 = vrot.slane %v208, 4
  %v219 = vrot.slane %v210, 4
  %v220 = vrot.slane %v212, 4
  %v221 = vrot.slane %v214, 4
  %v222 = vrot.slane %v216, 4
  %v223 = vsel %vm63, %v217, %v218
  %vm224 = vcmask 908288
  %v225 = vsel %vm224, %v206, %v223
  %v226 = vsel %vm63, %v218, %v219
  %v227 = vsel %vm224, %v208, %v226
  %v228 = vsel %vm224, %v210, %v219
  %v229 = vsel %vm63, %v220, %v221
  %v230 = vsel %vm224, %v212, %v229
  %v231 = vsel %vm63, %v221, %v222
  %v232 = vsel %vm224, %v214, %v231
  %v233 = vsel %vm224, %v216, %v222
  %240 = vst [vmem:[#allocation2 + $0xa0] sm:$0xff] %v225
  %241 = vst [vmem:[#allocation2 + $0xa8] sm:$0xff] %v227
  %242 = vst [vmem:[#allocation2 + $0xb0] sm:$0xf] %v228
  %243 = vst [vmem:[#allocation2 + $0xb4] sm:$0xff] %v230
  %244 = vst [vmem:[#allocation2 + $0xbc] sm:$0xff] %v232
  %245 = vst [vmem:[#allocation2 + $0xc4] sm:$0xf] %v233
  %v246 = vld [vmem:[%s0] sm:$0xff]
  %v247 = vld [vmem:[%s0 + $0x8] sm:$0xff]
  %v248 = vld [vmem:[%s0 + $0x10] sm:$0xff]
  %v249 = vld [vmem:[%s0 + $0x18] sm:$0xff]
  %v250 = vld [vmem:[%s0 + $0x20] sm:$0xff]
  %v251 = vld [vmem:[%s0 + $0x28] sm:$0xff]
  %258 = vrot.lane.b32.xlu0 %v246, 110
  %v259 = vpop.permute.xlu0 %258
  %260 = vrot.lane.b32.xlu0 %v247, 110
  %v261 = vpop.permute.xlu0 %260
  %262 = vrot.lane.b32.xlu0 %v248, 110
  %v263 = vpop.permute.xlu0 %262
  %264 = vrot.lane.b32.xlu0 %v249, 110
  %v265 = vpop.permute.xlu0 %264
  %266 = vrot.lane.b32.xlu0 %v250, 110
  %v267 = vpop.permute.xlu0 %266
  %268 = vrot.lane.b32.xlu0 %v251, 110
  %v269 = vpop.permute.xlu0 %268
  %v270 = vrot.slane %v259, 4
  %v271 = vrot.slane %v261, 4
  %v272 = vrot.slane %v263, 4
  %v273 = vrot.slane %v265, 4
  %v274 = vrot.slane %v267, 4
  %v275 = vrot.slane %v269, 4
  %v276 = vsel %vm63, %v270, %v271
  %vm277 = vcmask 900096
  %v278 = vsel %vm277, %v259, %v276
  %v279 = vsel %vm63, %v271, %v272
  %v280 = vsel %vm277, %v261, %v279
  %v281 = vsel %vm277, %v263, %v272
  %v282 = vsel %vm63, %v273, %v274
  %v283 = vsel %vm277, %v265, %v282
  %v284 = vsel %vm63, %v274, %v275
  %v285 = vsel %vm277, %v267, %v284
  %v286 = vsel %vm277, %v269, %v275
  %293 = vst [vmem:[#allocation2 + $0xc8] sm:$0xff] %v278
  %294 = vst [vmem:[#allocation2 + $0xd0] sm:$0xff] %v280
  %295 = vst [vmem:[#allocation2 + $0xd8] sm:$0xf] %v281
  %296 = vst [vmem:[#allocation2 + $0xdc] sm:$0xff] %v283
  %297 = vst [vmem:[#allocation2 + $0xe4] sm:$0xff] %v285
  %298 = vst [vmem:[#allocation2 + $0xec] sm:$0xf] %v286
  %v299 = vld [vmem:[%s0] sm:$0xff]
  %v300 = vld [vmem:[%s0 + $0x8] sm:$0xff]
  %v301 = vld [vmem:[%s0 + $0x10] sm:$0xff]
  %v302 = vld [vmem:[%s0 + $0x18] sm:$0xff]
  %v303 = vld [vmem:[%s0 + $0x20] sm:$0xff]
  %v304 = vld [vmem:[%s0 + $0x28] sm:$0xff]
  %311 = vrot.lane.b32.xlu0 %v299, 96
  %v312 = vpop.permute.xlu0 %311
  %313 = vrot.lane.b32.xlu0 %v300, 96
  %v314 = vpop.permute.xlu0 %313
  %315 = vrot.lane.b32.xlu0 %v301, 96
  %v316 = vpop.permute.xlu0 %315
  %317 = vrot.lane.b32.xlu0 %v302, 96
  %v318 = vpop.permute.xlu0 %317
  %319 = vrot.lane.b32.xlu0 %v303, 96
  %v320 = vpop.permute.xlu0 %319
  %321 = vrot.lane.b32.xlu0 %v304, 96
  %v322 = vpop.permute.xlu0 %321
  %v323 = vrot.slane %v312, 4
  %v324 = vrot.slane %v314, 4
  %v325 = vrot.slane %v316, 4
  %v326 = vrot.slane %v318, 4
  %v327 = vrot.slane %v320, 4
  %v328 = vrot.slane %v322, 4
  %v329 = vsel %vm63, %v323, %v324
  %vm330 = vcmask 785408
  %v331 = vsel %vm330, %v312, %v329
  %v332 = vsel %vm63, %v324, %v325
  %v333 = vsel %vm330, %v314, %v332
  %v334 = vsel %vm330, %v316, %v325
  %v335 = vsel %vm63, %v326, %v327
  %v336 = vsel %vm330, %v318, %v335
  %v337 = vsel %vm63, %v327, %v328
  %v338 = vsel %vm330, %v320, %v337
  %v339 = vsel %vm330, %v322, %v328
  %346 = vst [vmem:[#allocation2 + $0xf0] sm:$0xff] %v331
  %347 = vst [vmem:[#allocation2 + $0xf8] sm:$0xff] %v333
  %348 = vst [vmem:[#allocation2 + $0x100] sm:$0xf] %v334
  %349 = vst [vmem:[#allocation2 + $0x104] sm:$0xff] %v336
  %350 = vst [vmem:[#allocation2 + $0x10c] sm:$0xff] %v338
  %351 = vst [vmem:[#allocation2 + $0x114] sm:$0xf] %v339
  %v352 = vld [vmem:[%s0] sm:$0xff]
  %v353 = vld [vmem:[%s0 + $0x8] sm:$0xff]
  %v354 = vld [vmem:[%s0 + $0x10] sm:$0xff]
  %v355 = vld [vmem:[%s0 + $0x18] sm:$0xff]
  %v356 = vld [vmem:[%s0 + $0x20] sm:$0xff]
  %v357 = vld [vmem:[%s0 + $0x28] sm:$0xff]
  %364 = vrot.lane.b32.xlu0 %v352, 95
  %v365 = vpop.permute.xlu0 %364
  %366 = vrot.lane.b32.xlu0 %v353, 95
  %v367 = vpop.permute.xlu0 %366
  %368 = vrot.lane.b32.xlu0 %v354, 95
  %v369 = vpop.permute.xlu0 %368
  %370 = vrot.lane.b32.xlu0 %v355, 95
  %v371 = vpop.permute.xlu0 %370
  %372 = vrot.lane.b32.xlu0 %v356, 95
  %v373 = vpop.permute.xlu0 %372
  %374 = vrot.lane.b32.xlu0 %v357, 95
  %v375 = vpop.permute.xlu0 %374
  %v376 = vrot.slane %v365, 4
  %v377 = vrot.slane %v367, 4
  %v378 = vrot.slane %v369, 4
  %v379 = vrot.slane %v371, 4
  %v380 = vrot.slane %v373, 4
  %v381 = vrot.slane %v375, 4
  %v382 = vsel %vm63, %v376, %v377
  %vm383 = vcmask 777216
  %v384 = vsel %vm383, %v365, %v382
  %v385 = vsel %vm63, %v377, %v378
  %v386 = vsel %vm383, %v367, %v385
  %v387 = vsel %vm383, %v369, %v378
  %v388 = vsel %vm63, %v379, %v380
  %v389 = vsel %vm383, %v371, %v388
  %v390 = vsel %vm63, %v380, %v381
  %v391 = vsel %vm383, %v373, %v390
  %v392 = vsel %vm383, %v375, %v381
  %399 = vst [vmem:[#allocation2 + $0x118] sm:$0xff] %v384
  %400 = vst [vmem:[#allocation2 + $0x120] sm:$0xff] %v386
  %401 = vst [vmem:[#allocation2 + $0x128] sm:$0xf] %v387
  %402 = vst [vmem:[#allocation2 + $0x12c] sm:$0xff] %v389
  %403 = vst [vmem:[#allocation2 + $0x134] sm:$0xff] %v391
  %404 = vst [vmem:[#allocation2 + $0x13c] sm:$0xf] %v392
  %v405 = vld [vmem:[%s0] sm:$0xff]
  %v406 = vld [vmem:[%s0 + $0x8] sm:$0xff]
  %v407 = vld [vmem:[%s0 + $0x10] sm:$0xff]
  %v408 = vld [vmem:[%s0 + $0x18] sm:$0xff]
  %v409 = vld [vmem:[%s0 + $0x20] sm:$0xff]
  %v410 = vld [vmem:[%s0 + $0x28] sm:$0xff]
  %417 = vrot.lane.b32.xlu0 %v405, 94
  %v418 = vpop.permute.xlu0 %417
  %419 = vrot.lane.b32.xlu0 %v406, 94
  %v420 = vpop.permute.xlu0 %419
  %421 = vrot.lane.b32.xlu0 %v407, 94
  %v422 = vpop.permute.xlu0 %421
  %423 = vrot.lane.b32.xlu0 %v408, 94
  %v424 = vpop.permute.xlu0 %423
  %425 = vrot.lane.b32.xlu0 %v409, 94
  %v426 = vpop.permute.xlu0 %425
  %427 = vrot.lane.b32.xlu0 %v410, 94
  %v428 = vpop.permute.xlu0 %427
  %v429 = vrot.slane %v418, 4
  %v430 = vrot.slane %v420, 4
  %v431 = vrot.slane %v422, 4
  %v432 = vrot.slane %v424, 4
  %v433 = vrot.slane %v426, 4
  %v434 = vrot.slane %v428, 4
  %v435 = vsel %vm63, %v429, %v430
  %vm436 = vcmask 769024
  %v437 = vsel %vm436, %v418, %v435
  %v438 = vsel %vm63, %v430, %v431
  %v439 = vsel %vm436, %v420, %v438
  %v440 = vsel %vm436, %v422, %v431
  %v441 = vsel %vm63, %v432, %v433
  %v442 = vsel %vm436, %v424, %v441
  %v443 = vsel %vm63, %v433, %v434
  %v444 = vsel %vm436, %v426, %v443
  %v445 = vsel %vm436, %v428, %v434
  %452 = vst [vmem:[#allocation2 + $0x140] sm:$0xff] %v437
  %453 = vst [vmem:[#allocation2 + $0x148] sm:$0xff] %v439
  %454 = vst [vmem:[#allocation2 + $0x150] sm:$0xf] %v440
  %455 = vst [vmem:[#allocation2 + $0x154] sm:$0xff] %v442
  %456 = vst [vmem:[#allocation2 + $0x15c] sm:$0xff] %v444
  %457 = vst [vmem:[#allocation2 + $0x164] sm:$0xf] %v445
  %v458 = vld [vmem:[%s1] sm:$0xff]
  %v459 = vld [vmem:[%s1 + $0x8] sm:$0xff]
  %v460 = vld [vmem:[#allocation2] sm:$0xff]
  %v461 = vld [vmem:[#allocation2 + $0x8] sm:$0xff]
  %v462 = vld [vmem:[#allocation2 + $0x10] sm:$0xf]
  %v463 = vld [vmem:[#allocation2 + $0x14] sm:$0xff]
  %v464 = vld [vmem:[#allocation2 + $0x1c] sm:$0xff]
  %v465 = vld [vmem:[#allocation2 + $0x24] sm:$0xf]
  %v466 = vld [vmem:[#allocation2 + $0x28] sm:$0xff]
  %v467 = vld [vmem:[#allocation2 + $0x30] sm:$0xff]
  %v468 = vld [vmem:[#allocation2 + $0x38] sm:$0xf]
  %v469 = vld [vmem:[#allocation2 + $0x3c] sm:$0xff]
  %v470 = vld [vmem:[#allocation2 + $0x44] sm:$0xff]
  %v471 = vld [vmem:[#allocation2 + $0x4c] sm:$0xf]
  %v472 = vld [vmem:[#allocation2 + $0x50] sm:$0xff]
  %v473 = vld [vmem:[#allocation2 + $0x58] sm:$0xff]
  %v474 = vld [vmem:[#allocation2 + $0x60] sm:$0xf]
  %v475 = vld [vmem:[#allocation2 + $0x64] sm:$0xff]
  %v476 = vld [vmem:[#allocation2 + $0x6c] sm:$0xff]
  %v477 = vld [vmem:[#allocation2 + $0x74] sm:$0xf]
  %v478 = vld [vmem:[#allocation2 + $0x78] sm:$0xff]
  %v479 = vld [vmem:[#allocation2 + $0x80] sm:$0xff]
  %v480 = vld [vmem:[#allocation2 + $0x88] sm:$0xf]
  %v481 = vld [vmem:[#allocation2 + $0x8c] sm:$0xff]
  %v482 = vld [vmem:[#allocation2 + $0x94] sm:$0xff]
  %v483 = vld [vmem:[#allocation2 + $0x9c] sm:$0xf]
  %v484 = vld [vmem:[#allocation2 + $0xa0] sm:$0xff]
  %v485 = vld [vmem:[#allocation2 + $0xa8] sm:$0xff]
  %v486 = vld [vmem:[#allocation2 + $0xb0] sm:$0xf]
  %v487 = vld [vmem:[#allocation2 + $0xb4] sm:$0xff]
  %v488 = vld [vmem:[#allocation2 + $0xbc] sm:$0xff]
  %v489 = vld [vmem:[#allocation2 + $0xc4] sm:$0xf]
  %v490 = vld [vmem:[#allocation2 + $0xc8] sm:$0xff]
  %v491 = vld [vmem:[#allocation2 + $0xd0] sm:$0xff]
  %v492 = vld [vmem:[#allocation2 + $0xd8] sm:$0xf]
  %v493 = vld [vmem:[#allocation2 + $0xdc] sm:$0xff]
  %v494 = vld [vmem:[#allocation2 + $0xe4] sm:$0xff]
  %v495 = vld [vmem:[#allocation2 + $0xec] sm:$0xf]
  %v496 = vld [vmem:[#allocation2 + $0xf0] sm:$0xff]
  %v497 = vld [vmem:[#allocation2 + $0xf8] sm:$0xff]
  %v498 = vld [vmem:[#allocation2 + $0x100] sm:$0xf]
  %v499 = vld [vmem:[#allocation2 + $0x104] sm:$0xff]
  %v500 = vld [vmem:[#allocation2 + $0x10c] sm:$0xff]
  %v501 = vld [vmem:[#allocation2 + $0x114] sm:$0xf]
  %v502 = vld [vmem:[#allocation2 + $0x118] sm:$0xff]
  %v503 = vld [vmem:[#allocation2 + $0x120] sm:$0xff]
  %v504 = vld [vmem:[#allocation2 + $0x128] sm:$0xf]
  %v505 = vld [vmem:[#allocation2 + $0x12c] sm:$0xff]
  %v506 = vld [vmem:[#allocation2 + $0x134] sm:$0xff]
  %v507 = vld [vmem:[#allocation2 + $0x13c] sm:$0xf]
  %v508 = vld [vmem:[#allocation2 + $0x140] sm:$0xff]
  %v509 = vld [vmem:[#allocation2 + $0x148] sm:$0xff]
  %v510 = vld [vmem:[#allocation2 + $0x150] sm:$0xf]
  %v511 = vld [vmem:[#allocation2 + $0x154] sm:$0xff]
  %v512 = vld [vmem:[#allocation2 + $0x15c] sm:$0xff]
  %v513 = vld [vmem:[#allocation2 + $0x164] sm:$0xf]
  %v516 = vunpack.c.l.b16 %v458
  %v517 = vunpack.c.h.b16 %v458
  %v518 = vunpack.c.l.b16 %v459
  %v519 = vunpack.c.h.b16 %v459
  %v520 = vpack.c.b16 %v518, %v516
  %v521 = vpack.c.b16 %v519, %v517
  %v577 = vunpack.c.l.b16 %v460
  %v578 = vunpack.c.h.b16 %v460
  %v579 = vunpack.c.l.b16 %v461
  %v580 = vunpack.c.h.b16 %v461
  %v581 = vunpack.c.l.b16 %v462
  %v582 = vunpack.c.l.b16 %v463
  %v583 = vunpack.c.h.b16 %v463
  %v584 = vunpack.c.l.b16 %v464
  %v585 = vunpack.c.h.b16 %v464
  %v586 = vunpack.c.l.b16 %v465
  %v587 = vunpack.c.l.b16 %v466
  %v588 = vunpack.c.h.b16 %v466
  %v589 = vunpack.c.l.b16 %v467
  %v590 = vunpack.c.h.b16 %v467
  %v591 = vunpack.c.l.b16 %v468
  %v592 = vunpack.c.l.b16 %v469
  %v593 = vunpack.c.h.b16 %v469
  %v594 = vunpack.c.l.b16 %v470
  %v595 = vunpack.c.h.b16 %v470
  %v596 = vunpack.c.l.b16 %v471
  %v597 = vunpack.c.l.b16 %v472
  %v598 = vunpack.c.h.b16 %v472
  %v599 = vunpack.c.l.b16 %v473
  %v600 = vunpack.c.h.b16 %v473
  %v601 = vunpack.c.l.b16 %v474
  %v602 = vunpack.c.l.b16 %v475
  %v603 = vunpack.c.h.b16 %v475
  %v604 = vunpack.c.l.b16 %v476
  %v605 = vunpack.c.h.b16 %v476
  %v606 = vunpack.c.l.b16 %v477
  %v607 = vunpack.c.l.b16 %v478
  %v608 = vunpack.c.h.b16 %v478
  %v609 = vunpack.c.l.b16 %v479
  %v610 = vunpack.c.h.b16 %v479
  %v611 = vunpack.c.l.b16 %v480
  %v612 = vunpack.c.l.b16 %v481
  %v613 = vunpack.c.h.b16 %v481
  %v614 = vunpack.c.l.b16 %v482
  %v615 = vunpack.c.h.b16 %v482
  %v616 = vunpack.c.l.b16 %v483
  %v617 = vunpack.c.l.b16 %v484
  %v618 = vunpack.c.h.b16 %v484
  %v619 = vunpack.c.l.b16 %v485
  %v620 = vunpack.c.h.b16 %v485
  %v621 = vunpack.c.l.b16 %v486
  %v622 = vunpack.c.l.b16 %v487
  %v623 = vunpack.c.h.b16 %v487
  %v624 = vunpack.c.l.b16 %v488
  %v625 = vunpack.c.h.b16 %v488
  %v626 = vunpack.c.l.b16 %v489
  %v627 = vunpack.c.l.b16 %v490
  %v628 = vunpack.c.h.b16 %v490
  %v629 = vunpack.c.l.b16 %v491
  %v630 = vunpack.c.h.b16 %v491
  %v631 = vunpack.c.l.b16 %v492
  %v632 = vunpack.c.l.b16 %v493
  %v633 = vunpack.c.h.b16 %v493
  %v634 = vunpack.c.l.b16 %v494
  %v635 = vunpack.c.h.b16 %v494
  %v636 = vunpack.c.l.b16 %v495
  %v637 = vunpack.c.l.b16 %v496
  %v638 = vunpack.c.h.b16 %v496
  %v639 = vunpack.c.l.b16 %v497
  %v640 = vunpack.c.h.b16 %v497
  %v641 = vunpack.c.l.b16 %v498
  %v642 = vunpack.c.l.b16 %v499
  %v643 = vunpack.c.h.b16 %v499
  %v644 = vunpack.c.l.b16 %v500
  %v645 = vunpack.c.h.b16 %v500
  %v646 = vunpack.c.l.b16 %v501
  %v647 = vunpack.c.l.b16 %v502
  %v648 = vunpack.c.h.b16 %v502
  %v649 = vunpack.c.l.b16 %v503
  %v650 = vunpack.c.h.b16 %v503
  %v651 = vunpack.c.l.b16 %v504
  %v652 = vunpack.c.l.b16 %v505
  %v653 = vunpack.c.h.b16 %v505
  %v654 = vunpack.c.l.b16 %v506
  %v655 = vunpack.c.h.b16 %v506
  %v656 = vunpack.c.l.b16 %v507
  %v657 = vunpack.c.l.b16 %v508
  %v658 = vunpack.c.h.b16 %v508
  %v659 = vunpack.c.l.b16 %v509
  %v660 = vunpack.c.h.b16 %v509
  %v661 = vunpack.c.l.b16 %v510
  %v662 = vunpack.c.l.b16 %v511
  %v663 = vunpack.c.h.b16 %v511
  %v664 = vunpack.c.l.b16 %v512
  %v665 = vunpack.c.h.b16 %v512
  %v666 = vunpack.c.l.b16 %v513
  %v667 = vpack.c.b16 %v582, %v577
  %v668 = vpack.c.b16 %v583, %v578
  %v669 = vpack.c.b16 %v584, %v579
  %v670 = vpack.c.b16 %v585, %v580
  %v671 = vpack.c.b16 %v586, %v581
  %v672 = vpack.c.b16 %v592, %v587
  %v673 = vpack.c.b16 %v593, %v588
  %v674 = vpack.c.b16 %v594, %v589
  %v675 = vpack.c.b16 %v595, %v590
  %v676 = vpack.c.b16 %v596, %v591
  %v677 = vpack.c.b16 %v602, %v597
  %v678 = vpack.c.b16 %v603, %v598
  %v679 = vpack.c.b16 %v604, %v599
  %v680 = vpack.c.b16 %v605, %v600
  %v681 = vpack.c.b16 %v606, %v601
  %v682 = vpack.c.b16 %v612, %v607
  %v683 = vpack.c.b16 %v613, %v608
  %v684 = vpack.c.b16 %v614, %v609
  %v685 = vpack.c.b16 %v615, %v610
  %v686 = vpack.c.b16 %v616, %v611
  %v687 = vpack.c.b16 %v622, %v617
  %v688 = vpack.c.b16 %v623, %v618
  %v689 = vpack.c.b16 %v624, %v619
  %v690 = vpack.c.b16 %v625, %v620
  %v691 = vpack.c.b16 %v626, %v621
  %v692 = vpack.c.b16 %v632, %v627
  %v693 = vpack.c.b16 %v633, %v628
  %v694 = vpack.c.b16 %v634, %v629
  %v695 = vpack.c.b16 %v635, %v630
  %v696 = vpack.c.b16 %v636, %v631
  %v697 = vpack.c.b16 %v642, %v637
  %v698 = vpack.c.b16 %v643, %v638
  %v699 = vpack.c.b16 %v644, %v639
  %v700 = vpack.c.b16 %v645, %v640
  %v701 = vpack.c.b16 %v646, %v641
  %v702 = vpack.c.b16 %v652, %v647
  %v703 = vpack.c.b16 %v653, %v648
  %v704 = vpack.c.b16 %v654, %v649
  %v705 = vpack.c.b16 %v655, %v650
  %v706 = vpack.c.b16 %v656, %v651
  %v707 = vpack.c.b16 %v662, %v657
  %v708 = vpack.c.b16 %v663, %v658
  %v709 = vpack.c.b16 %v664, %v659
  %v710 = vpack.c.b16 %v665, %v660
  %v711 = vpack.c.b16 %v666, %v661
  %vm757 = vcmask 130048
  %v759 = vsel %vm757, %v521, 0
  %761 = vmatpush.bf16.msra.mxu0 %v702
  %762 = vmatpush.bf16.msra.mxu0 %v697
  %763 = vmatpush.bf16.msra.mxu0 %v692
  %764 = vmatpush.bf16.msra.mxu0 %v687
  %765 = vmatpush.bf16.msra.mxu0 %v682
  %766 = vmatpush.bf16.msra.mxu0 %v677
  %767 = vmatpush.bf16.msra.mxu0 %v672
  %768 = vmatpush.bf16.msra.mxu0 %v667
  %769 = vmatmul.bf16.gmra.mxu0 %v520
  %v770 = vpop.f32.mrf.mxu0
  %v771 = vadd.f32 0.0, %v770
  %v772 = vpop.f32.mrf.mxu0
  %v773 = vadd.f32 0.0, %v772
  %774 = vdwg.mxu0
  %775 = vmatpush.bf16.msra.mxu0 0
  %776 = vmatpush.bf16.msra.mxu0 0
  %777 = vmatpush.bf16.msra.mxu0 0
  %778 = vmatpush.bf16.msra.mxu0 0
  %779 = vmatpush.bf16.msra.mxu0 0
  %780 = vmatpush.bf16.msra.mxu0 0
  %781 = vmatpush.bf16.msra.mxu0 0
  %782 = vmatpush.bf16.msra.mxu0 %v707
  %783 = vmatmul.bf16.gmra.mxu0 %v759
  %v784 = vpop.f32.mrf.mxu0
  %v785 = vadd.f32 %v771, %v784
  %v786 = vpop.f32.mrf.mxu0
  %v787 = vadd.f32 %v773, %v786
  %788 = vdwg.mxu0
  %789 = vmatpush.bf16.msra.mxu0 %v703
  %790 = vmatpush.bf16.msra.mxu0 %v698
  %791 = vmatpush.bf16.msra.mxu0 %v693
  %792 = vmatpush.bf16.msra.mxu0 %v688
  %793 = vmatpush.bf16.msra.mxu0 %v683
  %794 = vmatpush.bf16.msra.mxu0 %v678
  %795 = vmatpush.bf16.msra.mxu0 %v673
  %796 = vmatpush.bf16.msra.mxu0 %v668
  %797 = vmatmul.bf16.gmra.mxu0 %v520
  %v798 = vpop.f32.mrf.mxu0
  %v799 = vadd.f32 0.0, %v798
  %v800 = vpop.f32.mrf.mxu0
  %v801 = vadd.f32 0.0, %v800
  %802 = vdwg.mxu0
  %803 = vmatpush.bf16.msra.mxu0 0
  %804 = vmatpush.bf16.msra.mxu0 0
  %805 = vmatpush.bf16.msra.mxu0 0
  %806 = vmatpush.bf16.msra.mxu0 0
  %807 = vmatpush.bf16.msra.mxu0 0
  %808 = vmatpush.bf16.msra.mxu0 0
  %809 = vmatpush.bf16.msra.mxu0 0
  %810 = vmatpush.bf16.msra.mxu0 %v708
  %811 = vmatmul.bf16.gmra.mxu0 %v759
  %v812 = vpop.f32.mrf.mxu0
  %v813 = vadd.f32 %v799, %v812
  %v814 = vpop.f32.mrf.mxu0
  %v815 = vadd.f32 %v801, %v814
  %816 = vdwg.mxu0
  %817 = vmatpush.bf16.msra.mxu0 %v704
  %818 = vmatpush.bf16.msra.mxu0 %v699
  %819 = vmatpush.bf16.msra.mxu0 %v694
  %820 = vmatpush.bf16.msra.mxu0 %v689
  %821 = vmatpush.bf16.msra.mxu0 %v684
  %822 = vmatpush.bf16.msra.mxu0 %v679
  %823 = vmatpush.bf16.msra.mxu0 %v674
  %824 = vmatpush.bf16.msra.mxu0 %v669
  %825 = vmatmul.bf16.gmra.mxu0 %v520
  %v826 = vpop.f32.mrf.mxu0
  %v827 = vadd.f32 0.0, %v826
  %v828 = vpop.f32.mrf.mxu0
  %v829 = vadd.f32 0.0, %v828
  %830 = vdwg.mxu0
  %831 = vmatpush.bf16.msra.mxu0 0
  %832 = vmatpush.bf16.msra.mxu0 0
  %833 = vmatpush.bf16.msra.mxu0 0
  %834 = vmatpush.bf16.msra.mxu0 0
  %835 = vmatpush.bf16.msra.mxu0 0
  %836 = vmatpush.bf16.msra.mxu0 0
  %837 = vmatpush.bf16.msra.mxu0 0
  %838 = vmatpush.bf16.msra.mxu0 %v709
  %839 = vmatmul.bf16.gmra.mxu0 %v759
  %v840 = vpop.f32.mrf.mxu0
  %v841 = vadd.f32 %v827, %v840
  %v842 = vpop.f32.mrf.mxu0
  %v843 = vadd.f32 %v829, %v842
  %844 = vdwg.mxu0
  %845 = vmatpush.bf16.msra.mxu0 %v705
  %846 = vmatpush.bf16.msra.mxu0 %v700
  %847 = vmatpush.bf16.msra.mxu0 %v695
  %848 = vmatpush.bf16.msra.mxu0 %v690
  %849 = vmatpush.bf16.msra.mxu0 %v685
  %850 = vmatpush.bf16.msra.mxu0 %v680
  %851 = vmatpush.bf16.msra.mxu0 %v675
  %852 = vmatpush.bf16.msra.mxu0 %v670
  %853 = vmatmul.bf16.gmra.mxu0 %v520
  %v854 = vpop.f32.mrf.mxu0
  %v855 = vadd.f32 0.0, %v854
  %v856 = vpop.f32.mrf.mxu0
  %v857 = vadd.f32 0.0, %v856
  %858 = vdwg.mxu0
  %859 = vmatpush.bf16.msra.mxu0 0
  %860 = vmatpush.bf16.msra.mxu0 0
  %861 = vmatpush.bf16.msra.mxu0 0
  %862 = vmatpush.bf16.msra.mxu0 0
  %863 = vmatpush.bf16.msra.mxu0 0
  %864 = vmatpush.bf16.msra.mxu0 0
  %865 = vmatpush.bf16.msra.mxu0 0
  %866 = vmatpush.bf16.msra.mxu0 %v710
  %867 = vmatmul.bf16.gmra.mxu0 %v759
  %v868 = vpop.f32.mrf.mxu0
  %v869 = vadd.f32 %v855, %v868
  %v870 = vpop.f32.mrf.mxu0
  %v871 = vadd.f32 %v857, %v870
  %872 = vdwg.mxu0
  %873 = vmatpush.bf16.msra.mxu0 %v706
  %874 = vmatpush.bf16.msra.mxu0 %v701
  %875 = vmatpush.bf16.msra.mxu0 %v696
  %876 = vmatpush.bf16.msra.mxu0 %v691
  %877 = vmatpush.bf16.msra.mxu0 %v686
  %878 = vmatpush.bf16.msra.mxu0 %v681
  %879 = vmatpush.bf16.msra.mxu0 %v676
  %880 = vmatpush.bf16.msra.mxu0 %v671
  %881 = vmatmul.bf16.gmra.mxu0 %v520
  %v882 = vpop.f32.mrf.mxu0
  %v883 = vadd.f32 0.0, %v882
  %v884 = vpop.f32.mrf.mxu0
  %v885 = vadd.f32 0.0, %v884
  %886 = vdwg.mxu0
  %887 = vmatpush.bf16.msra.mxu0 0
  %888 = vmatpush.bf16.msra.mxu0 0
  %889 = vmatpush.bf16.msra.mxu0 0
  %890 = vmatpush.bf16.msra.mxu0 0
  %891 = vmatpush.bf16.msra.mxu0 0
  %892 = vmatpush.bf16.msra.mxu0 0
  %893 = vmatpush.bf16.msra.mxu0 0
  %894 = vmatpush.bf16.msra.mxu0 %v711
  %895 = vmatmul.bf16.gmra.mxu0 %v759
  %v896 = vpop.f32.mrf.mxu0
  %v897 = vadd.f32 %v883, %v896
  %v898 = vpop.f32.mrf.mxu0
  %v899 = vadd.f32 %v885, %v898
  %900 = vdwg.mxu0
  %v901 = vld [vmem:[%s3] sm:$0x1f]
  %v903 = vperm.slane %v901, 0
  %v904 = vperm.slane %v901, 1
  %v905 = vperm.slane %v901, 2
  %v906 = vperm.slane %v901, 3
  %v907 = vperm.slane %v901, 4
  %v913 = vmul.f32 %v785, %v903
  %v914 = vmul.f32 %v813, %v904
  %v915 = vmul.f32 %v841, %v905
  %v916 = vmul.f32 %v869, %v906
  %v917 = vmul.f32 %v897, %v907
  %v918 = vmul.f32 %v787, %v903
  %v919 = vmul.f32 %v815, %v904
  %v920 = vmul.f32 %v843, %v905
  %v921 = vmul.f32 %v871, %v906
  %v922 = vmul.f32 %v899, %v907
  %v923 = vadd.f32 %v913, %v914
  %v924 = vadd.f32 %v923, %v915
  %v925 = vadd.f32 %v924, %v916
  %v926 = vadd.f32 %v925, %v917
  %927 = vadd.xlane.f32.xlu0 %v926
  %v928 = vpop.xlane.xlu0 %927
  %v929 = vadd.f32 %v918, %v919
  %v930 = vadd.f32 %v929, %v920
  %v931 = vadd.f32 %v930, %v921
  %v932 = vadd.f32 %v931, %v922
  %933 = vadd.xlane.f32.xlu0 %v932
  %v934 = vpop.xlane.xlu0 %933
  %v935 = vmul.f32 %v928, 0.0025510204
  %v936 = vmul.f32 %v934, 0.0025510204
  %v937 = vmul.f32 %v913, %v785
  %v938 = vmul.f32 %v914, %v813
  %v939 = vmul.f32 %v915, %v841
  %v940 = vmul.f32 %v916, %v869
  %v941 = vmul.f32 %v917, %v897
  %v942 = vmul.f32 %v918, %v787
  %v943 = vmul.f32 %v919, %v815
  %v944 = vmul.f32 %v920, %v843
  %v945 = vmul.f32 %v921, %v871
  %v946 = vmul.f32 %v922, %v899
  %v947 = vadd.f32 %v937, %v938
  %v948 = vadd.f32 %v947, %v939
  %v949 = vadd.f32 %v948, %v940
  %v950 = vadd.f32 %v949, %v941
  %951 = vadd.xlane.f32.xlu0 %v950
  %v952 = vpop.xlane.xlu0 %951
  %v953 = vadd.f32 %v942, %v943
  %v954 = vadd.f32 %v953, %v944
  %v955 = vadd.f32 %v954, %v945
  %v956 = vadd.f32 %v955, %v946
  %957 = vadd.xlane.f32.xlu0 %v956
  %v958 = vpop.xlane.xlu0 %957
  %v959 = vmul.f32 %v952, 0.0025510204
  %v960 = vmul.f32 %v958, 0.0025510204
  %v961 = vmul.f32 %v935, %v935
  %v962 = vmul.f32 %v936, %v936
  %v963 = vsub.f32 %v959, %v961
  %v964 = vsub.f32 %v960, %v962
  %v965 = vsub.f32 %v785, %v935
  %v966 = vsub.f32 %v813, %v935
  %v967 = vsub.f32 %v841, %v935
  %v968 = vsub.f32 %v869, %v935
  %v969 = vsub.f32 %v897, %v935
  %v970 = vsub.f32 %v787, %v936
  %v971 = vsub.f32 %v815, %v936
  %v972 = vsub.f32 %v843, %v936
  %v973 = vsub.f32 %v871, %v936
  %v974 = vsub.f32 %v899, %v936
  %v975 = vadd.f32 %v963, 1e-05
  %v976 = vadd.f32 %v964, 1e-05
  %v977 = vrsqrt.pop %v975
  %v978 = vmul.f32 %v977, %v975
  %v979 = vmul.f32 %v978, %v977
  %v980 = vmul.f32 0.5, %v979
  %v981 = vsub.f32 1.5, %v980
  %v982 = vmul.f32 %v977, %v981
  %vm983 = vweird.f32 %v975
  %vm984 = vweird.f32 %v977
  %vm985 = vmor %vm983, %vm984
  %v986 = vsel %vm985, %v977, %v982
  %v987 = vrsqrt.pop %v976
  %v988 = vmul.f32 %v987, %v976
  %v989 = vmul.f32 %v988, %v987
  %v990 = vmul.f32 0.5, %v989
  %v991 = vsub.f32 1.5, %v990
  %v992 = vmul.f32 %v987, %v991
  %vm993 = vweird.f32 %v976
  %vm994 = vweird.f32 %v987
  %vm995 = vmor %vm993, %vm994
  %v996 = vsel %vm995, %v987, %v992
  %v997 = vmul.f32 %v965, %v986
  %v998 = vmul.f32 %v966, %v986
  %v999 = vmul.f32 %v967, %v986
  %v1000 = vmul.f32 %v968, %v986
  %v1001 = vmul.f32 %v969, %v986
  %v1002 = vmul.f32 %v970, %v996
  %v1003 = vmul.f32 %v971, %v996
  %v1004 = vmul.f32 %v972, %v996
  %v1005 = vmul.f32 %v973, %v996
  %v1006 = vmul.f32 %v974, %v996
  %v1007 = vmul.f32 %v997, 0.01
  %v1008 = vmul.f32 %v998, 0.01
  %v1009 = vmul.f32 %v999, 0.01
  %v1010 = vmul.f32 %v1000, 0.01
  %v1011 = vmul.f32 %v1001, 0.01
  %v1012 = vmul.f32 %v1002, 0.01
  %v1013 = vmul.f32 %v1003, 0.01
  %v1014 = vmul.f32 %v1004, 0.01
  %v1015 = vmul.f32 %v1005, 0.01
  %v1016 = vmul.f32 %v1006, 0.01
  %v1017 = vmax.f32 %v997, %v1007
  %v1018 = vmax.f32 %v998, %v1008
  %v1019 = vmax.f32 %v999, %v1009
  %v1020 = vmax.f32 %v1000, %v1010
  %v1021 = vmax.f32 %v1001, %v1011
  %v1022 = vmax.f32 %v1002, %v1012
  %v1023 = vmax.f32 %v1003, %v1013
  %v1024 = vmax.f32 %v1004, %v1014
  %v1025 = vmax.f32 %v1005, %v1015
  %v1026 = vmax.f32 %v1006, %v1016
  %v1027 = vpack.c.bf16 %v1018, %v1017
  %v1028 = vpack.c.bf16 %v1020, %v1019
  %v1029 = vpack.c.bf16 %v1021, %v1021
  %v1030 = vpack.c.bf16 %v1023, %v1022
  %v1031 = vpack.c.bf16 %v1025, %v1024
  %v1032 = vpack.c.bf16 %v1026, %v1026
  %1033 = vst [vmem:[#allocation3] sm:$0xff] %v1027
  %1034 = vst [vmem:[#allocation3 + $0x8] sm:$0xff] %v1028
  %1035 = vst [vmem:[#allocation3 + $0x10] sm:$0xf] %v1029
  %1036 = vst [vmem:[#allocation3 + $0x14] sm:$0xff] %v1030
  %1037 = vst [vmem:[#allocation3 + $0x1c] sm:$0xff] %v1031
  %1038 = vst [vmem:[#allocation3 + $0x24] sm:$0xf] %v1032
  %v1039 = vld [vmem:[#allocation3] sm:$0xff]
  %v1040 = vld [vmem:[#allocation3 + $0x8] sm:$0xff]
  %v1041 = vld [vmem:[#allocation3 + $0x14] sm:$0xff]
  %v1042 = vld [vmem:[#allocation3 + $0x1c] sm:$0xff]
  %1043 = vst [vmem:[#allocation4] sm:$0xff] %v1039
  %1044 = vst [vmem:[#allocation4 + $0x8] sm:$0xff] %v1040
  %1045 = vst [vmem:[#allocation4 + $0x10] sm:$0xff] %v1041
  %1046 = vst [vmem:[#allocation4 + $0x18] sm:$0xff] %v1042
  %v1047 = vld [vmem:[#allocation3] sm:$0xff]
  %v1048 = vld [vmem:[#allocation3 + $0x8] sm:$0xff]
  %v1049 = vld [vmem:[#allocation3 + $0x10] sm:$0xf]
  %v1050 = vld [vmem:[#allocation3 + $0x14] sm:$0xff]
  %v1051 = vld [vmem:[#allocation3 + $0x1c] sm:$0xff]
  %v1052 = vld [vmem:[#allocation3 + $0x24] sm:$0xf]
  %1059 = vrot.lane.b32.xlu0 %v1047, 127
  %v1060 = vpop.permute.xlu0 %1059
  %1061 = vrot.lane.b32.xlu0 %v1048, 127
  %v1062 = vpop.permute.xlu0 %1061
  %1063 = vrot.lane.b32.xlu0 %v1049, 127
  %v1064 = vpop.permute.xlu0 %1063
  %1065 = vrot.lane.b32.xlu0 %v1050, 127
  %v1066 = vpop.permute.xlu0 %1065
  %1067 = vrot.lane.b32.xlu0 %v1051, 127
  %v1068 = vpop.permute.xlu0 %1067
  %1069 = vrot.lane.b32.xlu0 %v1052, 127
  %v1070 = vpop.permute.xlu0 %1069
  %v1071 = vrot.slane %v1060, 4
  %v1072 = vrot.slane %v1062, 4
  %v1073 = vrot.slane %v1064, 4
  %v1074 = vrot.slane %v1066, 4
  %v1075 = vrot.slane %v1068, 4
  %v1076 = vrot.slane %v1070, 4
  %v1077 = vsel %vm63, %v1071, %v1072
  %v1078 = vsel %vm65, %v1060, %v1077
  %v1079 = vsel %vm63, %v1072, %v1073
  %v1080 = vsel %vm65, %v1062, %v1079
  %v1081 = vsel %vm63, %v1074, %v1075
  %v1082 = vsel %vm65, %v1066, %v1081
  %v1083 = vsel %vm63, %v1075, %v1076
  %v1084 = vsel %vm65, %v1068, %v1083
  %1089 = vst [vmem:[#allocation4 + $0x20] sm:$0xff] %v1078
  %1090 = vst [vmem:[#allocation4 + $0x28] sm:$0xff] %v1080
  %1091 = vst [vmem:[#allocation4 + $0x30] sm:$0xff] %v1082
  %1092 = vst [vmem:[#allocation4 + $0x38] sm:$0xff] %v1084
  %v1093 = vld [vmem:[#allocation3] sm:$0xff]
  %v1094 = vld [vmem:[#allocation3 + $0x8] sm:$0xff]
  %v1095 = vld [vmem:[#allocation3 + $0x10] sm:$0xf]
  %v1096 = vld [vmem:[#allocation3 + $0x14] sm:$0xff]
  %v1097 = vld [vmem:[#allocation3 + $0x1c] sm:$0xff]
  %v1098 = vld [vmem:[#allocation3 + $0x24] sm:$0xf]
  %1105 = vrot.lane.b32.xlu0 %v1093, 126
  %v1106 = vpop.permute.xlu0 %1105
  %1107 = vrot.lane.b32.xlu0 %v1094, 126
  %v1108 = vpop.permute.xlu0 %1107
  %1109 = vrot.lane.b32.xlu0 %v1095, 126
  %v1110 = vpop.permute.xlu0 %1109
  %1111 = vrot.lane.b32.xlu0 %v1096, 126
  %v1112 = vpop.permute.xlu0 %1111
  %1113 = vrot.lane.b32.xlu0 %v1097, 126
  %v1114 = vpop.permute.xlu0 %1113
  %1115 = vrot.lane.b32.xlu0 %v1098, 126
  %v1116 = vpop.permute.xlu0 %1115
  %v1117 = vrot.slane %v1106, 4
  %v1118 = vrot.slane %v1108, 4
  %v1119 = vrot.slane %v1110, 4
  %v1120 = vrot.slane %v1112, 4
  %v1121 = vrot.slane %v1114, 4
  %v1122 = vrot.slane %v1116, 4
  %v1123 = vsel %vm63, %v1117, %v1118
  %v1124 = vsel %vm118, %v1106, %v1123
  %v1125 = vsel %vm63, %v1118, %v1119
  %v1126 = vsel %vm118, %v1108, %v1125
  %v1127 = vsel %vm63, %v1120, %v1121
  %v1128 = vsel %vm118, %v1112, %v1127
  %v1129 = vsel %vm63, %v1121, %v1122
  %v1130 = vsel %vm118, %v1114, %v1129
  %1135 = vst [vmem:[#allocation4 + $0x40] sm:$0xff] %v1124
  %1136 = vst [vmem:[#allocation4 + $0x48] sm:$0xff] %v1126
  %1137 = vst [vmem:[#allocation4 + $0x50] sm:$0xff] %v1128
  %1138 = vst [vmem:[#allocation4 + $0x58] sm:$0xff] %v1130
  %v1139 = vld [vmem:[#allocation3] sm:$0xff]
  %v1140 = vld [vmem:[#allocation3 + $0x8] sm:$0xff]
  %v1141 = vld [vmem:[#allocation3 + $0x10] sm:$0xf]
  %v1142 = vld [vmem:[#allocation3 + $0x14] sm:$0xff]
  %v1143 = vld [vmem:[#allocation3 + $0x1c] sm:$0xff]
  %v1144 = vld [vmem:[#allocation3 + $0x24] sm:$0xf]
  %1151 = vrot.lane.b32.xlu0 %v1139, 112
  %v1152 = vpop.permute.xlu0 %1151
  %1153 = vrot.lane.b32.xlu0 %v1140, 112
  %v1154 = vpop.permute.xlu0 %1153
  %1155 = vrot.lane.b32.xlu0 %v1141, 112
  %v1156 = vpop.permute.xlu0 %1155
  %1157 = vrot.lane.b32.xlu0 %v1142, 112
  %v1158 = vpop.permute.xlu0 %1157
  %1159 = vrot.lane.b32.xlu0 %v1143, 112
  %v1160 = vpop.permute.xlu0 %1159
  %1161 = vrot.lane.b32.xlu0 %v1144, 112
  %v1162 = vpop.permute.xlu0 %1161
  %v1163 = vrot.slane %v1152, 4
  %v1164 = vrot.slane %v1154, 4
  %v1165 = vrot.slane %v1156, 4
  %v1166 = vrot.slane %v1158, 4
  %v1167 = vrot.slane %v1160, 4
  %v1168 = vrot.slane %v1162, 4
  %v1169 = vsel %vm63, %v1163, %v1164
  %v1170 = vsel %vm171, %v1152, %v1169
  %v1171 = vsel %vm63, %v1164, %v1165
  %v1172 = vsel %vm171, %v1154, %v1171
  %v1173 = vsel %vm63, %v1166, %v1167
  %v1174 = vsel %vm171, %v1158, %v1173
  %v1175 = vsel %vm63, %v1167, %v1168
  %v1176 = vsel %vm171, %v1160, %v1175
  %1181 = vst [vmem:[#allocation4 + $0x60] sm:$0xff] %v1170
  %1182 = vst [vmem:[#allocation4 + $0x68] sm:$0xff] %v1172
  %1183 = vst [vmem:[#allocation4 + $0x70] sm:$0xff] %v1174
  %1184 = vst [vmem:[#allocation4 + $0x78] sm:$0xff] %v1176
  %v1185 = vld [vmem:[#allocation3] sm:$0xff]
  %v1186 = vld [vmem:[#allocation3 + $0x8] sm:$0xff]
  %v1187 = vld [vmem:[#allocation3 + $0x10] sm:$0xf]
  %v1188 = vld [vmem:[#allocation3 + $0x14] sm:$0xff]
  %v1189 = vld [vmem:[#allocation3 + $0x1c] sm:$0xff]
  %v1190 = vld [vmem:[#allocation3 + $0x24] sm:$0xf]
  %1197 = vrot.lane.b32.xlu0 %v1185, 111
  %v1198 = vpop.permute.xlu0 %1197
  %1199 = vrot.lane.b32.xlu0 %v1186, 111
  %v1200 = vpop.permute.xlu0 %1199
  %1201 = vrot.lane.b32.xlu0 %v1187, 111
  %v1202 = vpop.permute.xlu0 %1201
  %1203 = vrot.lane.b32.xlu0 %v1188, 111
  %v1204 = vpop.permute.xlu0 %1203
  %1205 = vrot.lane.b32.xlu0 %v1189, 111
  %v1206 = vpop.permute.xlu0 %1205
  %1207 = vrot.lane.b32.xlu0 %v1190, 111
  %v1208 = vpop.permute.xlu0 %1207
  %v1209 = vrot.slane %v1198, 4
  %v1210 = vrot.slane %v1200, 4
  %v1211 = vrot.slane %v1202, 4
  %v1212 = vrot.slane %v1204, 4
  %v1213 = vrot.slane %v1206, 4
  %v1214 = vrot.slane %v1208, 4
  %v1215 = vsel %vm63, %v1209, %v1210
  %v1216 = vsel %vm224, %v1198, %v1215
  %v1217 = vsel %vm63, %v1210, %v1211
  %v1218 = vsel %vm224, %v1200, %v1217
  %v1219 = vsel %vm63, %v1212, %v1213
  %v1220 = vsel %vm224, %v1204, %v1219
  %v1221 = vsel %vm63, %v1213, %v1214
  %v1222 = vsel %vm224, %v1206, %v1221
  %1227 = vst [vmem:[#allocation4 + $0x80] sm:$0xff] %v1216
  %1228 = vst [vmem:[#allocation4 + $0x88] sm:$0xff] %v1218
  %1229 = vst [vmem:[#allocation4 + $0x90] sm:$0xff] %v1220
  %1230 = vst [vmem:[#allocation4 + $0x98] sm:$0xff] %v1222
  %v1231 = vld [vmem:[#allocation3] sm:$0xff]
  %v1232 = vld [vmem:[#allocation3 + $0x8] sm:$0xff]
  %v1233 = vld [vmem:[#allocation3 + $0x10] sm:$0xf]
  %v1234 = vld [vmem:[#allocation3 + $0x14] sm:$0xff]
  %v1235 = vld [vmem:[#allocation3 + $0x1c] sm:$0xff]
  %v1236 = vld [vmem:[#allocation3 + $0x24] sm:$0xf]
  %1243 = vrot.lane.b32.xlu0 %v1231, 110
  %v1244 = vpop.permute.xlu0 %1243
  %1245 = vrot.lane.b32.xlu0 %v1232, 110
  %v1246 = vpop.permute.xlu0 %1245
  %1247 = vrot.lane.b32.xlu0 %v1233, 110
  %v1248 = vpop.permute.xlu0 %1247
  %1249 = vrot.lane.b32.xlu0 %v1234, 110
  %v1250 = vpop.permute.xlu0 %1249
  %1251 = vrot.lane.b32.xlu0 %v1235, 110
  %v1252 = vpop.permute.xlu0 %1251
  %1253 = vrot.lane.b32.xlu0 %v1236, 110
  %v1254 = vpop.permute.xlu0 %1253
  %v1255 = vrot.slane %v1244, 4
  %v1256 = vrot.slane %v1246, 4
  %v1257 = vrot.slane %v1248, 4
  %v1258 = vrot.slane %v1250, 4
  %v1259 = vrot.slane %v1252, 4
  %v1260 = vrot.slane %v1254, 4
  %v1261 = vsel %vm63, %v1255, %v1256
  %v1262 = vsel %vm277, %v1244, %v1261
  %v1263 = vsel %vm63, %v1256, %v1257
  %v1264 = vsel %vm277, %v1246, %v1263
  %v1265 = vsel %vm63, %v1258, %v1259
  %v1266 = vsel %vm277, %v1250, %v1265
  %v1267 = vsel %vm63, %v1259, %v1260
  %v1268 = vsel %vm277, %v1252, %v1267
  %1273 = vst [vmem:[#allocation4 + $0xa0] sm:$0xff] %v1262
  %1274 = vst [vmem:[#allocation4 + $0xa8] sm:$0xff] %v1264
  %1275 = vst [vmem:[#allocation4 + $0xb0] sm:$0xff] %v1266
  %1276 = vst [vmem:[#allocation4 + $0xb8] sm:$0xff] %v1268
  %v1277 = vld [vmem:[#allocation3] sm:$0xff]
  %v1278 = vld [vmem:[#allocation3 + $0x8] sm:$0xff]
  %v1279 = vld [vmem:[#allocation3 + $0x10] sm:$0xf]
  %v1280 = vld [vmem:[#allocation3 + $0x14] sm:$0xff]
  %v1281 = vld [vmem:[#allocation3 + $0x1c] sm:$0xff]
  %v1282 = vld [vmem:[#allocation3 + $0x24] sm:$0xf]
  %1289 = vrot.lane.b32.xlu0 %v1277, 96
  %v1290 = vpop.permute.xlu0 %1289
  %1291 = vrot.lane.b32.xlu0 %v1278, 96
  %v1292 = vpop.permute.xlu0 %1291
  %1293 = vrot.lane.b32.xlu0 %v1279, 96
  %v1294 = vpop.permute.xlu0 %1293
  %1295 = vrot.lane.b32.xlu0 %v1280, 96
  %v1296 = vpop.permute.xlu0 %1295
  %1297 = vrot.lane.b32.xlu0 %v1281, 96
  %v1298 = vpop.permute.xlu0 %1297
  %1299 = vrot.lane.b32.xlu0 %v1282, 96
  %v1300 = vpop.permute.xlu0 %1299
  %v1301 = vrot.slane %v1290, 4
  %v1302 = vrot.slane %v1292, 4
  %v1303 = vrot.slane %v1294, 4
  %v1304 = vrot.slane %v1296, 4
  %v1305 = vrot.slane %v1298, 4
  %v1306 = vrot.slane %v1300, 4
  %v1307 = vsel %vm63, %v1301, %v1302
  %v1308 = vsel %vm330, %v1290, %v1307
  %v1309 = vsel %vm63, %v1302, %v1303
  %v1310 = vsel %vm330, %v1292, %v1309
  %v1311 = vsel %vm63, %v1304, %v1305
  %v1312 = vsel %vm330, %v1296, %v1311
  %v1313 = vsel %vm63, %v1305, %v1306
  %v1314 = vsel %vm330, %v1298, %v1313
  %1319 = vst [vmem:[#allocation4 + $0xc0] sm:$0xff] %v1308
  %1320 = vst [vmem:[#allocation4 + $0xc8] sm:$0xff] %v1310
  %1321 = vst [vmem:[#allocation4 + $0xd0] sm:$0xff] %v1312
  %1322 = vst [vmem:[#allocation4 + $0xd8] sm:$0xff] %v1314
  %v1323 = vld [vmem:[#allocation3] sm:$0xff]
  %v1324 = vld [vmem:[#allocation3 + $0x8] sm:$0xff]
  %v1325 = vld [vmem:[#allocation3 + $0x10] sm:$0xf]
  %v1326 = vld [vmem:[#allocation3 + $0x14] sm:$0xff]
  %v1327 = vld [vmem:[#allocation3 + $0x1c] sm:$0xff]
  %v1328 = vld [vmem:[#allocation3 + $0x24] sm:$0xf]
  %1335 = vrot.lane.b32.xlu0 %v1323, 95
  %v1336 = vpop.permute.xlu0 %1335
  %1337 = vrot.lane.b32.xlu0 %v1324, 95
  %v1338 = vpop.permute.xlu0 %1337
  %1339 = vrot.lane.b32.xlu0 %v1325, 95
  %v1340 = vpop.permute.xlu0 %1339
  %1341 = vrot.lane.b32.xlu0 %v1326, 95
  %v1342 = vpop.permute.xlu0 %1341
  %1343 = vrot.lane.b32.xlu0 %v1327, 95
  %v1344 = vpop.permute.xlu0 %1343
  %1345 = vrot.lane.b32.xlu0 %v1328, 95
  %v1346 = vpop.permute.xlu0 %1345
  %v1347 = vrot.slane %v1336, 4
  %v1348 = vrot.slane %v1338, 4
  %v1349 = vrot.slane %v1340, 4
  %v1350 = vrot.slane %v1342, 4
  %v1351 = vrot.slane %v1344, 4
  %v1352 = vrot.slane %v1346, 4
  %v1353 = vsel %vm63, %v1347, %v1348
  %v1354 = vsel %vm383, %v1336, %v1353
  %v1355 = vsel %vm63, %v1348, %v1349
  %v1356 = vsel %vm383, %v1338, %v1355
  %v1357 = vsel %vm63, %v1350, %v1351
  %v1358 = vsel %vm383, %v1342, %v1357
  %v1359 = vsel %vm63, %v1351, %v1352
  %v1360 = vsel %vm383, %v1344, %v1359
  %1365 = vst [vmem:[#allocation4 + $0xe0] sm:$0xff] %v1354
  %1366 = vst [vmem:[#allocation4 + $0xe8] sm:$0xff] %v1356
  %1367 = vst [vmem:[#allocation4 + $0xf0] sm:$0xff] %v1358
  %1368 = vst [vmem:[#allocation4 + $0xf8] sm:$0xff] %v1360
  %v1369 = vld [vmem:[#allocation3] sm:$0xff]
  %v1370 = vld [vmem:[#allocation3 + $0x8] sm:$0xff]
  %v1371 = vld [vmem:[#allocation3 + $0x10] sm:$0xf]
  %v1372 = vld [vmem:[#allocation3 + $0x14] sm:$0xff]
  %v1373 = vld [vmem:[#allocation3 + $0x1c] sm:$0xff]
  %v1374 = vld [vmem:[#allocation3 + $0x24] sm:$0xf]
  %1381 = vrot.lane.b32.xlu0 %v1369, 94
  %v1382 = vpop.permute.xlu0 %1381
  %1383 = vrot.lane.b32.xlu0 %v1370, 94
  %v1384 = vpop.permute.xlu0 %1383
  %1385 = vrot.lane.b32.xlu0 %v1371, 94
  %v1386 = vpop.permute.xlu0 %1385
  %1387 = vrot.lane.b32.xlu0 %v1372, 94
  %v1388 = vpop.permute.xlu0 %1387
  %1389 = vrot.lane.b32.xlu0 %v1373, 94
  %v1390 = vpop.permute.xlu0 %1389
  %1391 = vrot.lane.b32.xlu0 %v1374, 94
  %v1392 = vpop.permute.xlu0 %1391
  %v1393 = vrot.slane %v1382, 4
  %v1394 = vrot.slane %v1384, 4
  %v1395 = vrot.slane %v1386, 4
  %v1396 = vrot.slane %v1388, 4
  %v1397 = vrot.slane %v1390, 4
  %v1398 = vrot.slane %v1392, 4
  %v1399 = vsel %vm63, %v1393, %v1394
  %v1400 = vsel %vm436, %v1382, %v1399
  %v1401 = vsel %vm63, %v1394, %v1395
  %v1402 = vsel %vm436, %v1384, %v1401
  %v1403 = vsel %vm63, %v1396, %v1397
  %v1404 = vsel %vm436, %v1388, %v1403
  %v1405 = vsel %vm63, %v1397, %v1398
  %v1406 = vsel %vm436, %v1390, %v1405
  %1411 = vst [vmem:[#allocation4 + $0x100] sm:$0xff] %v1400
  %1412 = vst [vmem:[#allocation4 + $0x108] sm:$0xff] %v1402
  %1413 = vst [vmem:[#allocation4 + $0x110] sm:$0xff] %v1404
  %1414 = vst [vmem:[#allocation4 + $0x118] sm:$0xff] %v1406
  %v1415 = vld [vmem:[%s2] sm:$0xff]
  %v1416 = vld [vmem:[#allocation4] sm:$0xff]
  %v1417 = vld [vmem:[#allocation4 + $0x8] sm:$0xff]
  %v1418 = vld [vmem:[#allocation4 + $0x10] sm:$0xff]
  %v1419 = vld [vmem:[#allocation4 + $0x18] sm:$0xff]
  %v1420 = vld [vmem:[#allocation4 + $0x20] sm:$0xff]
  %v1421 = vld [vmem:[#allocation4 + $0x28] sm:$0xff]
  %v1422 = vld [vmem:[#allocation4 + $0x30] sm:$0xff]
  %v1423 = vld [vmem:[#allocation4 + $0x38] sm:$0xff]
  %v1424 = vld [vmem:[#allocation4 + $0x40] sm:$0xff]
  %v1425 = vld [vmem:[#allocation4 + $0x48] sm:$0xff]
  %v1426 = vld [vmem:[#allocation4 + $0x50] sm:$0xff]
  %v1427 = vld [vmem:[#allocation4 + $0x58] sm:$0xff]
  %v1428 = vld [vmem:[#allocation4 + $0x60] sm:$0xff]
  %v1429 = vld [vmem:[#allocation4 + $0x68] sm:$0xff]
  %v1430 = vld [vmem:[#allocation4 + $0x70] sm:$0xff]
  %v1431 = vld [vmem:[#allocation4 + $0x78] sm:$0xff]
  %v1432 = vld [vmem:[#allocation4 + $0x80] sm:$0xff]
  %v1433 = vld [vmem:[#allocation4 + $0x88] sm:$0xff]
  %v1434 = vld [vmem:[#allocation4 + $0x90] sm:$0xff]
  %v1435 = vld [vmem:[#allocation4 + $0x98] sm:$0xff]
  %v1436 = vld [vmem:[#allocation4 + $0xa0] sm:$0xff]
  %v1437 = vld [vmem:[#allocation4 + $0xa8] sm:$0xff]
  %v1438 = vld [vmem:[#allocation4 + $0xb0] sm:$0xff]
  %v1439 = vld [vmem:[#allocation4 + $0xb8] sm:$0xff]
  %v1440 = vld [vmem:[#allocation4 + $0xc0] sm:$0xff]
  %v1441 = vld [vmem:[#allocation4 + $0xc8] sm:$0xff]
  %v1442 = vld [vmem:[#allocation4 + $0xd0] sm:$0xff]
  %v1443 = vld [vmem:[#allocation4 + $0xd8] sm:$0xff]
  %v1444 = vld [vmem:[#allocation4 + $0xe0] sm:$0xff]
  %v1445 = vld [vmem:[#allocation4 + $0xe8] sm:$0xff]
  %v1446 = vld [vmem:[#allocation4 + $0xf0] sm:$0xff]
  %v1447 = vld [vmem:[#allocation4 + $0xf8] sm:$0xff]
  %v1448 = vld [vmem:[#allocation4 + $0x100] sm:$0xff]
  %v1449 = vld [vmem:[#allocation4 + $0x108] sm:$0xff]
  %v1450 = vld [vmem:[#allocation4 + $0x110] sm:$0xff]
  %v1451 = vld [vmem:[#allocation4 + $0x118] sm:$0xff]
  %v1453 = vunpack.c.l.b16 %v1415
  %v1454 = vunpack.c.h.b16 %v1415
  %v1455 = vpack.c.b16 %v1453, %v1453
  %v1456 = vpack.c.b16 %v1454, %v1454
  %v1494 = vunpack.c.l.b16 %v1416
  %v1495 = vunpack.c.h.b16 %v1416
  %v1496 = vunpack.c.l.b16 %v1417
  %v1497 = vunpack.c.h.b16 %v1417
  %v1498 = vunpack.c.l.b16 %v1418
  %v1499 = vunpack.c.h.b16 %v1418
  %v1500 = vunpack.c.l.b16 %v1419
  %v1501 = vunpack.c.h.b16 %v1419
  %v1502 = vunpack.c.l.b16 %v1420
  %v1503 = vunpack.c.h.b16 %v1420
  %v1504 = vunpack.c.l.b16 %v1421
  %v1505 = vunpack.c.h.b16 %v1421
  %v1506 = vunpack.c.l.b16 %v1422
  %v1507 = vunpack.c.h.b16 %v1422
  %v1508 = vunpack.c.l.b16 %v1423
  %v1509 = vunpack.c.h.b16 %v1423
  %v1510 = vunpack.c.l.b16 %v1424
  %v1511 = vunpack.c.h.b16 %v1424
  %v1512 = vunpack.c.l.b16 %v1425
  %v1513 = vunpack.c.h.b16 %v1425
  %v1514 = vunpack.c.l.b16 %v1426
  %v1515 = vunpack.c.h.b16 %v1426
  %v1516 = vunpack.c.l.b16 %v1427
  %v1517 = vunpack.c.h.b16 %v1427
  %v1518 = vunpack.c.l.b16 %v1428
  %v1519 = vunpack.c.h.b16 %v1428
  %v1520 = vunpack.c.l.b16 %v1429
  %v1521 = vunpack.c.h.b16 %v1429
  %v1522 = vunpack.c.l.b16 %v1430
  %v1523 = vunpack.c.h.b16 %v1430
  %v1524 = vunpack.c.l.b16 %v1431
  %v1525 = vunpack.c.h.b16 %v1431
  %v1526 = vunpack.c.l.b16 %v1432
  %v1527 = vunpack.c.h.b16 %v1432
  %v1528 = vunpack.c.l.b16 %v1433
  %v1529 = vunpack.c.h.b16 %v1433
  %v1530 = vunpack.c.l.b16 %v1434
  %v1531 = vunpack.c.h.b16 %v1434
  %v1532 = vunpack.c.l.b16 %v1435
  %v1533 = vunpack.c.h.b16 %v1435
  %v1534 = vunpack.c.l.b16 %v1436
  %v1535 = vunpack.c.h.b16 %v1436
  %v1536 = vunpack.c.l.b16 %v1437
  %v1537 = vunpack.c.h.b16 %v1437
  %v1538 = vunpack.c.l.b16 %v1438
  %v1539 = vunpack.c.h.b16 %v1438
  %v1540 = vunpack.c.l.b16 %v1439
  %v1541 = vunpack.c.h.b16 %v1439
  %v1542 = vunpack.c.l.b16 %v1440
  %v1543 = vunpack.c.h.b16 %v1440
  %v1544 = vunpack.c.l.b16 %v1441
  %v1545 = vunpack.c.h.b16 %v1441
  %v1546 = vunpack.c.l.b16 %v1442
  %v1547 = vunpack.c.h.b16 %v1442
  %v1548 = vunpack.c.l.b16 %v1443
  %v1549 = vunpack.c.h.b16 %v1443
  %v1550 = vunpack.c.l.b16 %v1444
  %v1551 = vunpack.c.h.b16 %v1444
  %v1552 = vunpack.c.l.b16 %v1445
  %v1553 = vunpack.c.h.b16 %v1445
  %v1554 = vunpack.c.l.b16 %v1446
  %v1555 = vunpack.c.h.b16 %v1446
  %v1556 = vunpack.c.l.b16 %v1447
  %v1557 = vunpack.c.h.b16 %v1447
  %v1558 = vunpack.c.l.b16 %v1448
  %v1559 = vunpack.c.h.b16 %v1448
  %v1560 = vunpack.c.l.b16 %v1449
  %v1561 = vunpack.c.h.b16 %v1449
  %v1562 = vunpack.c.l.b16 %v1450
  %v1563 = vunpack.c.h.b16 %v1450
  %v1564 = vunpack.c.l.b16 %v1451
  %v1565 = vunpack.c.h.b16 %v1451
  %v1566 = vpack.c.b16 %v1498, %v1494
  %v1567 = vpack.c.b16 %v1499, %v1495
  %v1568 = vpack.c.b16 %v1500, %v1496
  %v1569 = vpack.c.b16 %v1501, %v1497
  %v1570 = vpack.c.b16 %v1506, %v1502
  %v1571 = vpack.c.b16 %v1507, %v1503
  %v1572 = vpack.c.b16 %v1508, %v1504
  %v1573 = vpack.c.b16 %v1509, %v1505
  %v1574 = vpack.c.b16 %v1514, %v1510
  %v1575 = vpack.c.b16 %v1515, %v1511
  %v1576 = vpack.c.b16 %v1516, %v1512
  %v1577 = vpack.c.b16 %v1517, %v1513
  %v1578 = vpack.c.b16 %v1522, %v1518
  %v1579 = vpack.c.b16 %v1523, %v1519
  %v1580 = vpack.c.b16 %v1524, %v1520
  %v1581 = vpack.c.b16 %v1525, %v1521
  %v1582 = vpack.c.b16 %v1530, %v1526
  %v1583 = vpack.c.b16 %v1531, %v1527
  %v1584 = vpack.c.b16 %v1532, %v1528
  %v1585 = vpack.c.b16 %v1533, %v1529
  %v1586 = vpack.c.b16 %v1538, %v1534
  %v1587 = vpack.c.b16 %v1539, %v1535
  %v1588 = vpack.c.b16 %v1540, %v1536
  %v1589 = vpack.c.b16 %v1541, %v1537
  %v1590 = vpack.c.b16 %v1546, %v1542
  %v1591 = vpack.c.b16 %v1547, %v1543
  %v1592 = vpack.c.b16 %v1548, %v1544
  %v1593 = vpack.c.b16 %v1549, %v1545
  %v1594 = vpack.c.b16 %v1554, %v1550
  %v1595 = vpack.c.b16 %v1555, %v1551
  %v1596 = vpack.c.b16 %v1556, %v1552
  %v1597 = vpack.c.b16 %v1557, %v1553
  %v1598 = vpack.c.b16 %v1562, %v1558
  %v1599 = vpack.c.b16 %v1563, %v1559
  %v1600 = vpack.c.b16 %v1564, %v1560
  %v1601 = vpack.c.b16 %v1565, %v1561
  %v1639 = vsel %vm757, %v1456, 0
  %1641 = vmatpush.bf16.msra.mxu0 %v1594
  %1642 = vmatpush.bf16.msra.mxu0 %v1590
  %1643 = vmatpush.bf16.msra.mxu0 %v1586
  %1644 = vmatpush.bf16.msra.mxu0 %v1582
  %1645 = vmatpush.bf16.msra.mxu0 %v1578
  %1646 = vmatpush.bf16.msra.mxu0 %v1574
  %1647 = vmatpush.bf16.msra.mxu0 %v1570
  %1648 = vmatpush.bf16.msra.mxu0 %v1566
  %1649 = vmatmul.bf16.gmra.mxu0 %v1455
  %v1650 = vpop.f32.mrf.mxu0
  %v1651 = vadd.f32 0.0, %v1650
  %v1652 = vpop.f32.mrf.mxu0
  %1653 = vdwg.mxu0
  %1654 = vmatpush.bf16.msra.mxu0 0
  %1655 = vmatpush.bf16.msra.mxu0 0
  %1656 = vmatpush.bf16.msra.mxu0 0
  %1657 = vmatpush.bf16.msra.mxu0 0
  %1658 = vmatpush.bf16.msra.mxu0 0
  %1659 = vmatpush.bf16.msra.mxu0 0
  %1660 = vmatpush.bf16.msra.mxu0 0
  %1661 = vmatpush.bf16.msra.mxu0 %v1598
  %1662 = vmatmul.bf16.gmra.mxu0 %v1639
  %v1663 = vpop.f32.mrf.mxu0
  %v1664 = vadd.f32 %v1651, %v1663
  %v1665 = vpop.f32.mrf.mxu0
  %1666 = vdwg.mxu0
  %1667 = vmatpush.bf16.msra.mxu0 %v1595
  %1668 = vmatpush.bf16.msra.mxu0 %v1591
  %1669 = vmatpush.bf16.msra.mxu0 %v1587
  %1670 = vmatpush.bf16.msra.mxu0 %v1583
  %1671 = vmatpush.bf16.msra.mxu0 %v1579
  %1672 = vmatpush.bf16.msra.mxu0 %v1575
  %1673 = vmatpush.bf16.msra.mxu0 %v1571
  %1674 = vmatpush.bf16.msra.mxu0 %v1567
  %1675 = vmatmul.bf16.gmra.mxu0 %v1455
  %v1676 = vpop.f32.mrf.mxu0
  %v1677 = vadd.f32 0.0, %v1676
  %v1678 = vpop.f32.mrf.mxu0
  %1679 = vdwg.mxu0
  %1680 = vmatpush.bf16.msra.mxu0 0
  %1681 = vmatpush.bf16.msra.mxu0 0
  %1682 = vmatpush.bf16.msra.mxu0 0
  %1683 = vmatpush.bf16.msra.mxu0 0
  %1684 = vmatpush.bf16.msra.mxu0 0
  %1685 = vmatpush.bf16.msra.mxu0 0
  %1686 = vmatpush.bf16.msra.mxu0 0
  %1687 = vmatpush.bf16.msra.mxu0 %v1599
  %1688 = vmatmul.bf16.gmra.mxu0 %v1639
  %v1689 = vpop.f32.mrf.mxu0
  %v1690 = vadd.f32 %v1677, %v1689
  %v1691 = vpop.f32.mrf.mxu0
  %1692 = vdwg.mxu0
  %1693 = vmatpush.bf16.msra.mxu0 %v1596
  %1694 = vmatpush.bf16.msra.mxu0 %v1592
  %1695 = vmatpush.bf16.msra.mxu0 %v1588
  %1696 = vmatpush.bf16.msra.mxu0 %v1584
  %1697 = vmatpush.bf16.msra.mxu0 %v1580
  %1698 = vmatpush.bf16.msra.mxu0 %v1576
  %1699 = vmatpush.bf16.msra.mxu0 %v1572
  %1700 = vmatpush.bf16.msra.mxu0 %v1568
  %1701 = vmatmul.bf16.gmra.mxu0 %v1455
  %v1702 = vpop.f32.mrf.mxu0
  %v1703 = vadd.f32 0.0, %v1702
  %v1704 = vpop.f32.mrf.mxu0
  %1705 = vdwg.mxu0
  %1706 = vmatpush.bf16.msra.mxu0 0
  %1707 = vmatpush.bf16.msra.mxu0 0
  %1708 = vmatpush.bf16.msra.mxu0 0
  %1709 = vmatpush.bf16.msra.mxu0 0
  %1710 = vmatpush.bf16.msra.mxu0 0
  %1711 = vmatpush.bf16.msra.mxu0 0
  %1712 = vmatpush.bf16.msra.mxu0 0
  %1713 = vmatpush.bf16.msra.mxu0 %v1600
  %1714 = vmatmul.bf16.gmra.mxu0 %v1639
  %v1715 = vpop.f32.mrf.mxu0
  %v1716 = vadd.f32 %v1703, %v1715
  %v1717 = vpop.f32.mrf.mxu0
  %1718 = vdwg.mxu0
  %1719 = vmatpush.bf16.msra.mxu0 %v1597
  %1720 = vmatpush.bf16.msra.mxu0 %v1593
  %1721 = vmatpush.bf16.msra.mxu0 %v1589
  %1722 = vmatpush.bf16.msra.mxu0 %v1585
  %1723 = vmatpush.bf16.msra.mxu0 %v1581
  %1724 = vmatpush.bf16.msra.mxu0 %v1577
  %1725 = vmatpush.bf16.msra.mxu0 %v1573
  %1726 = vmatpush.bf16.msra.mxu0 %v1569
  %1727 = vmatmul.bf16.gmra.mxu0 %v1455
  %v1728 = vpop.f32.mrf.mxu0
  %v1729 = vadd.f32 0.0, %v1728
  %v1730 = vpop.f32.mrf.mxu0
  %1731 = vdwg.mxu0
  %1732 = vmatpush.bf16.msra.mxu0 0
  %1733 = vmatpush.bf16.msra.mxu0 0
  %1734 = vmatpush.bf16.msra.mxu0 0
  %1735 = vmatpush.bf16.msra.mxu0 0
  %1736 = vmatpush.bf16.msra.mxu0 0
  %1737 = vmatpush.bf16.msra.mxu0 0
  %1738 = vmatpush.bf16.msra.mxu0 0
  %1739 = vmatpush.bf16.msra.mxu0 %v1601
  %1740 = vmatmul.bf16.gmra.mxu0 %v1639
  %v1741 = vpop.f32.mrf.mxu0
  %v1742 = vadd.f32 %v1729, %v1741
  %v1743 = vpop.f32.mrf.mxu0
  %1744 = vdwg.mxu0
  %v1745 = vld [vmem:[%s4] sm:$0xf]
  %v1747 = vperm.slane %v1745, 0
  %v1748 = vperm.slane %v1745, 1
  %v1749 = vperm.slane %v1745, 2
  %v1750 = vperm.slane %v1745, 3
  %v1755 = vmul.f32 %v1664, %v1747
  %v1756 = vmul.f32 %v1690, %v1748
  %v1757 = vmul.f32 %v1716, %v1749
  %v1758 = vmul.f32 %v1742, %v1750
  %v1759 = vadd.f32 %v1755, %v1756
  %v1760 = vadd.f32 %v1759, %v1757
  %v1761 = vadd.f32 %v1760, %v1758
  %1762 = vadd.xlane.f32.xlu0 %v1761
  %v1763 = vpop.xlane.xlu0 %1762
  %v1764 = vmul.f32 %v1763, 0.0034722222
  %v1765 = vmul.f32 %v1755, %v1664
  %v1766 = vmul.f32 %v1756, %v1690
  %v1767 = vmul.f32 %v1757, %v1716
  %v1768 = vmul.f32 %v1758, %v1742
  %v1769 = vadd.f32 %v1765, %v1766
  %v1770 = vadd.f32 %v1769, %v1767
  %v1771 = vadd.f32 %v1770, %v1768
  %1772 = vadd.xlane.f32.xlu0 %v1771
  %v1773 = vpop.xlane.xlu0 %1772
  %v1774 = vmul.f32 %v1773, 0.0034722222
  %v1775 = vmul.f32 %v1764, %v1764
  %v1776 = vsub.f32 %v1774, %v1775
  %v1777 = vsub.f32 %v1664, %v1764
  %v1778 = vsub.f32 %v1690, %v1764
  %v1779 = vsub.f32 %v1716, %v1764
  %v1780 = vsub.f32 %v1742, %v1764
  %v1781 = vadd.f32 %v1776, 1e-05
  %v1782 = vrsqrt.pop %v1781
  %v1783 = vmul.f32 %v1782, %v1781
  %v1784 = vmul.f32 %v1783, %v1782
  %v1785 = vmul.f32 0.5, %v1784
  %v1786 = vsub.f32 1.5, %v1785
  %v1787 = vmul.f32 %v1782, %v1786
  %vm1788 = vweird.f32 %v1781
  %vm1789 = vweird.f32 %v1782
  %vm1790 = vmor %vm1788, %vm1789
  %v1791 = vsel %vm1790, %v1782, %v1787
  %v1792 = vmul.f32 %v1777, %v1791
  %v1793 = vmul.f32 %v1778, %v1791
  %v1794 = vmul.f32 %v1779, %v1791
  %v1795 = vmul.f32 %v1780, %v1791
  %v1796 = vmul.f32 %v1792, 0.01
  %v1797 = vmul.f32 %v1793, 0.01
  %v1798 = vmul.f32 %v1794, 0.01
  %v1799 = vmul.f32 %v1795, 0.01
  %v1800 = vmax.f32 %v1792, %v1796
  %v1801 = vmax.f32 %v1793, %v1797
  %v1802 = vmax.f32 %v1794, %v1798
  %v1803 = vmax.f32 %v1795, %v1799
  %v1804 = vpack.c.bf16 %v1801, %v1800
  %v1805 = vpack.c.bf16 %v1803, %v1802
  %1806 = vst [vmem:[%s5] sm:$0xff] %v1804
  %1807 = vst [vmem:[%s5 + $0x8] sm:$0xff] %v1805
  // Predicated region
  $region22: #{cnn_block_forward.1} parent=0 // pred_check
    _
  $region23: #{cnn_block_forward.1} parent=0 // pred_check_branch
    %1809 = sbr.rel (0) target = $region25
  $region24: #{cnn_block_forward.1} parent=0 // pred_region
    _
  $region25: #{cnn_block_forward.1} parent=0 // pred_fallthru
    _
  // Predicated region
  $region26: #{cnn_block_forward.1} parent=0 // pred_check
    _
  $region27: #{cnn_block_forward.1} parent=0 // pred_check_branch
    %1811 = sbr.rel (0) target = $region29
  $region28: #{cnn_block_forward.1} parent=0 // pred_region
    _
  $region29: #{cnn_block_forward.1} parent=0 // pred_fallthru
    _

</llo_original>
